<compile_context>
chip_gen: v5e
topology: v5e:2x2
jax: 0.10.0
libtpu: 0.0.40
codegen_flags: <defaults>
</compile_context>

<pallas_src>
import functools

import jax
import jax.numpy as jnp
from jax import lax
from jax.experimental import pallas as pl
from jax.experimental.pallas import tpu as pltpu

OUT_PAD = 128  # lane-dense padding for the final (hidden -> 1) projection


# ----------------------------------------------------------------------------- specs
def _full_spec(shape):
    # full-array block (no tiling needed at these sizes)
    return pl.BlockSpec(shape, lambda i, _nd=len(shape): (0,) * _nd)


# ----------------------------------------------------------------------------- attention (in-kernel helper)
def _gatv2_attention(xl, xr, e_proj, att_w, src_oh, dst_oh, dst_f, neg,
                     heads, channels, negative_slope):
    """GATv2 attention for one layer, traced inside the fused Pallas kernel.

    xl, xr : (N, H*C) f32  source / target transformed node features
    e_proj : (E, H*C) f32  projected edge features
    att_w  : (H*C, H) f32  block-diagonal per-head attention vectors
    src_oh, dst_oh : (E, N) bf16 one-hot masks (source / target node of edge)
    dst_f  : (E, N) f32 target mask, neg = (1 - dst_f) * 1e30
    returns agg : (N, H*C) f32 (per-head messages scattered to target nodes)
    """
    f32 = jnp.float32
    bf16 = jnp.bfloat16
    H, C = heads, channels
    HC = H * C
    E = e_proj.shape[0]

    # gather per-edge features on the MXU (bf16 operands, f32 accumulation)
    xl_j = jnp.dot(src_oh, xl.astype(bf16), preferred_element_type=f32)     # (E, HC)
    xr_i = jnp.dot(dst_oh, xr.astype(bf16), preferred_element_type=f32)     # (E, HC)

    s = xl_j + xr_i + e_proj
    s = jnp.where(s > 0.0, s, negative_slope * s)                           # leaky_relu
    logits = jnp.dot(s, att_w, preferred_element_type=f32)                  # (E, H)

    # --- segment softmax over edges sharing the same target node (all f32) ---
    # per-target-node max: one additive mask, H adds + H sublane max-reduces
    rows = []
    for h in range(H):                                                       # H <= 4, static
        rows.append(jnp.max(logits[:, h:h + 1] - neg, axis=0, keepdims=True))  # (1, N)
    m_node = rows[0] if H == 1 else jnp.concatenate(rows, axis=0)            # (H, N)

    # gather the per-node max back to edges (f32 MXU, contracts the node axis)
    m_edge = lax.dot_general(dst_f, m_node, (((1,), (1,)), ((), ())),
                             preferred_element_type=f32)                     # (E, H)
    ex = jnp.exp(logits - m_edge)                                            # (E, H)
    # denominator: scatter-add over edges, then gather back per edge (f32)
    denom = lax.dot_general(dst_f, ex, (((0,), (0,)), ((), ())),
                            preferred_element_type=f32)                      # (N, H)
    denom_e = jnp.dot(dst_f, denom, preferred_element_type=f32)              # (E, H)
    alpha = ex * pl.reciprocal(denom_e + 1e-9, approx=True)                  # (E, H)

    # broadcast alpha across each head's C lanes (layout work, no VALU selects)
    if H == 1:
        alpha_full = alpha                                                   # (E,1) bcast
    else:
        alpha_full = jnp.broadcast_to(alpha[:, :, None], (E, H, C)).reshape(E, HC)

    weighted = (xl_j * alpha_full).astype(bf16)
    # scatter-add messages into target nodes (head-concat is the identity layout)
    agg = lax.dot_general(dst_oh, weighted, (((0,), (0,)), ((), ())),
                          preferred_element_type=f32)                        # (N, HC)
    return agg


# ----------------------------------------------------------------------------- fused kernel (whole forward)
def _gat_fused_kernel(x_ref, ea_ref, src_ref, dst_ref,
                      w_in_ref, b_in_ref,
                      w_pack1_ref, b_pack1_ref, we1_ref, att1_ref, gb1_ref,
                      bn1_sc_ref, bn1_sh_ref,
                      g2_wl_ref, g2_bl_ref, g2_wr_ref, g2_br_ref,
                      we2_ref, att2_ref, gb2_ref, bn2_sc_ref, bn2_sh_ref,
                      w_out_ref, b_out_ref,
                      o_ref, *, hidden, heads, negative_slope):
    f32 = jnp.float32
    bf16 = jnp.bfloat16
    H, C = heads, hidden
    HC = H * C
    N = x_ref.shape[0]
    E = ea_ref.shape[0]

    # in-kernel one-hot gather/scatter masks from int32 edge ids (no (E,N) HBM input)
    node_iota = lax.broadcasted_iota(jnp.int32, (E, N), 1)
    src_oh = (node_iota == src_ref[...]).astype(bf16)                        # (E, N)
    dst_f = (node_iota == dst_ref[...]).astype(f32)                          # (E, N)
    dst_oh = dst_f.astype(bf16)
    neg = (1.0 - dst_f) * 1e30                                               # additive mask

    edge_attr = ea_ref[...]

    # ---- block 1: lin_in + ReLU -> GATv2(H heads) + residual -> BN -> ReLU ----
    h0 = jnp.dot(x_ref[...], w_in_ref[...], preferred_element_type=f32) + b_in_ref[...]
    h0 = jnp.maximum(h0, 0.0)

    # packed projections [x_l | x_r | res] : one lane-dense (hidden -> 3*HC) matmul
    proj1 = jnp.dot(h0, w_pack1_ref[...], preferred_element_type=f32) + b_pack1_ref[...]
    xl1 = proj1[:, :HC]                                                      # lane 0..HC
    xr1 = proj1[:, HC:2 * HC]                                                # 128-aligned
    res = proj1[:, 2 * HC:3 * HC]                                            # 128-aligned

    e1 = jnp.dot(edge_attr, we1_ref[...], preferred_element_type=f32)        # lin_edge (no bias)
    agg1 = _gatv2_attention(xl1, xr1, e1, att1_ref[...],
                            src_oh, dst_oh, dst_f, neg, H, C, negative_slope)
    h1 = jnp.maximum((agg1 + gb1_ref[...] + res) * bn1_sc_ref[...] + bn1_sh_ref[...], 0.0)

    # ---- block 2: GATv2(1 head, mean==identity) -> BN -> ReLU -> lin_out ----
    # two lane-aligned (4h -> h) matmuls instead of packed + misaligned slices
    xl2 = jnp.dot(h1, g2_wl_ref[...], preferred_element_type=f32) + g2_bl_ref[...]
    xr2 = jnp.dot(h1, g2_wr_ref[...], preferred_element_type=f32) + g2_br_ref[...]
    e2 = jnp.dot(edge_attr, we2_ref[...], preferred_element_type=f32)
    agg2 = _gatv2_attention(xl2, xr2, e2, att2_ref[...],
                            src_oh, dst_oh, dst_f, neg, 1, C, negative_slope)
    h2 = jnp.maximum((agg2 + gb2_ref[...]) * bn2_sc_ref[...] + bn2_sh_ref[...], 0.0)

    # lin_out padded to 128 output lanes -> lane-dense (unmasked) store
    o_ref[...] = jnp.dot(h2, w_out_ref[...], preferred_element_type=f32) + b_out_ref[...]


# ----------------------------------------------------------------------------- params
def init_params(key, in_channels, edge_dim, hidden, heads):
    HC = hidden * heads
    ks = jax.random.split(key, 16)
    s = 0.1

    def rn(k, shape):
        return jax.random.normal(k, shape, jnp.float32) * s

    p = {}
    p["lin_in_w"] = rn(ks[0], (in_channels, hidden)); p["lin_in_b"] = rn(ks[1], (hidden,))
    # GATv2Conv #1 (heads=4, concat=True)
    p["g1_wl"] = rn(ks[2], (hidden, HC)); p["g1_bl"] = rn(ks[3], (HC,))
    p["g1_wr"] = rn(ks[4], (hidden, HC)); p["g1_br"] = rn(ks[5], (HC,))
    p["g1_we"] = rn(ks[6], (edge_dim, HC))
    p["g1_att"] = rn(ks[7], (heads, hidden))
    p["g1_bias"] = rn(ks[8], (HC,))
    # residual linear
    p["res_w"] = rn(ks[9], (hidden, HC)); p["res_b"] = rn(ks[10], (HC,))
    # GATv2Conv #2 (heads=1, concat=False)
    p["g2_wl"] = rn(ks[11], (HC, hidden)); p["g2_bl"] = rn(ks[12], (hidden,))
    p["g2_wr"] = rn(ks[13], (HC, hidden)); p["g2_br"] = rn(ks[14], (hidden,))
    p["g2_we"] = rn(ks[15], (edge_dim, hidden))
    k2 = jax.random.split(ks[15], 4)
    p["g2_att"] = rn(k2[0], (1, hidden))
    p["g2_bias"] = rn(k2[1], (hidden,))
    # output linear
    p["lin_out_w"] = rn(k2[2], (hidden, 1)); p["lin_out_b"] = rn(k2[3], (1,))
    # BatchNorm1d eval-mode params (PyTorch defaults: gamma=1, beta=0, mean=0, var=1)
    eps = 1e-5
    p["bn1_scale"] = jnp.ones((HC,), jnp.float32) / jnp.sqrt(1.0 + eps)
    p["bn1_shift"] = jnp.zeros((HC,), jnp.float32)
    p["bn2_scale"] = jnp.ones((hidden,), jnp.float32) / jnp.sqrt(1.0 + eps)
    p["bn2_shift"] = jnp.zeros((hidden,), jnp.float32)
    return p


def _att_matrix(att):
    """att (H, C) -> block-diagonal (H*C, H) so logits[e,h] = sum_c s[e,h*C+c]*att[h,c]."""
    H, C = att.shape
    m = jnp.zeros((H * C, H), jnp.float32)
    for h in range(H):
        m = m.at[h * C:(h + 1) * C, h].set(att[h])
    return m


# ----------------------------------------------------------------------------- forward
def gat_improved_forward(p, x, edge_index, edge_attr, hidden, heads):
    N = x.shape[0]
    E = edge_index.shape[1]
    HC = hidden * heads

    # only the int32 edge ids go to the kernel (one-hots are built in-kernel)
    src_ids = edge_index[0].reshape(E, 1).astype(jnp.int32)
    dst_ids = edge_index[1].reshape(E, 1).astype(jnp.int32)

    # packed block-1 projections  [x_l | x_r | res] : (h, 3*HC), 128-aligned splits
    w_pack1 = jnp.concatenate([p["g1_wl"], p["g1_wr"], p["res_w"]], axis=1)
    b_pack1 = jnp.concatenate([p["g1_bl"], p["g1_br"], p["res_b"]]).reshape(1, 3 * HC)
    att1 = _att_matrix(p["g1_att"])                                          # (HC, H)
    att2 = _att_matrix(p["g2_att"])                                          # (h, 1)

    # lin_out padded to 128 output lanes (real column 0); lane-dense final store
    w_out_pad = jnp.zeros((hidden, OUT_PAD), jnp.float32).at[:, :1].set(p["lin_out_w"])
    b_out_pad = jnp.zeros((1, OUT_PAD), jnp.float32).at[:, :1].set(
        p["lin_out_b"].reshape(1, 1))

    args = (x, edge_attr, src_ids, dst_ids,
            p["lin_in_w"], p["lin_in_b"].reshape(1, -1),
            w_pack1, b_pack1, p["g1_we"], att1, p["g1_bias"].reshape(1, -1),
            p["bn1_scale"].reshape(1, -1), p["bn1_shift"].reshape(1, -1),
            p["g2_wl"], p["g2_bl"].reshape(1, -1),
            p["g2_wr"], p["g2_br"].reshape(1, -1),
            p["g2_we"], att2, p["g2_bias"].reshape(1, -1),
            p["bn2_scale"].reshape(1, -1), p["bn2_shift"].reshape(1, -1),
            w_out_pad, b_out_pad)

    kernel = functools.partial(_gat_fused_kernel, hidden=hidden, heads=heads,
                               negative_slope=0.2)
    out_pad = pl.pallas_call(
        kernel,
        out_shape=jax.ShapeDtypeStruct((N, OUT_PAD), jnp.float32),
        grid=(1,),
        in_specs=[_full_spec(a.shape) for a in args],
        out_specs=_full_spec((N, OUT_PAD)),
        compiler_params=pltpu.CompilerParams(
            dimension_semantics=("arbitrary",),
            vmem_limit_bytes=48 * 1024 * 1024),
    )(*args)
    return out_pad[:, :1]


# ----------------------------------------------------------------------------- main
if __name__ == "__main__":
    IN_CHANNELS, EDGE_DIM, HIDDEN, HEADS = 16, 8, 32, 4
    N_NODES = 8

    key = jax.random.PRNGKey(0)
    k_x, k_e, k_p = jax.random.split(key, 3)

    x = jax.random.normal(k_x, (N_NODES, IN_CHANNELS), jnp.float32)

    # deterministic ring-like edge list; every node has 2 incoming edges
    src = list(range(N_NODES)) + list(range(N_NODES))
    dst = [(i + 1) % N_NODES for i in range(N_NODES)] + [(i + 2) % N_NODES for i in range(N_NODES)]
    edge_index = jnp.array([src, dst], dtype=jnp.int32)            # (2, E), E = 16
    edge_attr = jax.random.normal(k_e, (edge_index.shape[1], EDGE_DIM), jnp.float32)

    params = init_params(k_p, IN_CHANNELS, EDGE_DIM, HIDDEN, HEADS)

    out = gat_improved_forward(params, x, edge_index, edge_attr, HIDDEN, HEADS)
    out = jax.block_until_ready(out)
    assert out.shape == (N_NODES, 1) and bool(jnp.all(jnp.isfinite(out)))
    print("KERNEL_OK")
</pallas_src>

<mosaic_0001>
module attributes {stable_mosaic.version = 11 : i64} {
  func.func @_gat_fused_kernel(%arg0: i32, %arg1: memref<8x16xf32, #tpu.memory_space<vmem>>, %arg2: memref<16x8xf32, #tpu.memory_space<vmem>>, %arg3: memref<16x1xi32, #tpu.memory_space<vmem>>, %arg4: memref<16x1xi32, #tpu.memory_space<vmem>>, %arg5: memref<16x32xf32, #tpu.memory_space<vmem>>, %arg6: memref<1x32xf32, #tpu.memory_space<vmem>>, %arg7: memref<32x384xf32, #tpu.memory_space<vmem>>, %arg8: memref<1x384xf32, #tpu.memory_space<vmem>>, %arg9: memref<8x128xf32, #tpu.memory_space<vmem>>, %arg10: memref<128x4xf32, #tpu.memory_space<vmem>>, %arg11: memref<1x128xf32, #tpu.memory_space<vmem>>, %arg12: memref<1x128xf32, #tpu.memory_space<vmem>>, %arg13: memref<1x128xf32, #tpu.memory_space<vmem>>, %arg14: memref<128x32xf32, #tpu.memory_space<vmem>>, %arg15: memref<1x32xf32, #tpu.memory_space<vmem>>, %arg16: memref<128x32xf32, #tpu.memory_space<vmem>>, %arg17: memref<1x32xf32, #tpu.memory_space<vmem>>, %arg18: memref<8x32xf32, #tpu.memory_space<vmem>>, %arg19: memref<32x1xf32, #tpu.memory_space<vmem>>, %arg20: memref<1x32xf32, #tpu.memory_space<vmem>>, %arg21: memref<1x32xf32, #tpu.memory_space<vmem>>, %arg22: memref<1x32xf32, #tpu.memory_space<vmem>>, %arg23: memref<32x128xf32, #tpu.memory_space<vmem>>, %arg24: memref<1x128xf32, #tpu.memory_space<vmem>>, %arg25: memref<8x128xf32, #tpu.memory_space<vmem>>) attributes {dimension_semantics = [#tpu.dimension_semantics<arbitrary>], iteration_bounds = array<i64: 1>, scalar_prefetch = 0 : i64, scratch_operands = 0 : i64, tpu.core_type = #tpu.core_type<tc>, window_params = [{pipeline_mode = #tpu.pipeline_mode<synchronous>, transform_indices = @transform_0, window_bounds = array<i64: 8, 16>}, {pipeline_mode = #tpu.pipeline_mode<synchronous>, transform_indices = @transform_1, window_bounds = array<i64: 16, 8>}, {pipeline_mode = #tpu.pipeline_mode<synchronous>, transform_indices = @transform_2, window_bounds = array<i64: 16, 1>}, {pipeline_mode = #tpu.pipeline_mode<synchronous>, transform_indices = @transform_3, window_bounds = array<i64: 16, 1>}, {pipeline_mode = #tpu.pipeline_mode<synchronous>, transform_indices = @transform_4, window_bounds = array<i64: 16, 32>}, {pipeline_mode = #tpu.pipeline_mode<synchronous>, transform_indices = @transform_5, window_bounds = array<i64: 1, 32>}, {pipeline_mode = #tpu.pipeline_mode<synchronous>, transform_indices = @transform_6, window_bounds = array<i64: 32, 384>}, {pipeline_mode = #tpu.pipeline_mode<synchronous>, transform_indices = @transform_7, window_bounds = array<i64: 1, 384>}, {pipeline_mode = #tpu.pipeline_mode<synchronous>, transform_indices = @transform_8, window_bounds = array<i64: 8, 128>}, {pipeline_mode = #tpu.pipeline_mode<synchronous>, transform_indices = @transform_9, window_bounds = array<i64: 128, 4>}, {pipeline_mode = #tpu.pipeline_mode<synchronous>, transform_indices = @transform_10, window_bounds = array<i64: 1, 128>}, {pipeline_mode = #tpu.pipeline_mode<synchronous>, transform_indices = @transform_11, window_bounds = array<i64: 1, 128>}, {pipeline_mode = #tpu.pipeline_mode<synchronous>, transform_indices = @transform_12, window_bounds = array<i64: 1, 128>}, {pipeline_mode = #tpu.pipeline_mode<synchronous>, transform_indices = @transform_13, window_bounds = array<i64: 128, 32>}, {pipeline_mode = #tpu.pipeline_mode<synchronous>, transform_indices = @transform_14, window_bounds = array<i64: 1, 32>}, {pipeline_mode = #tpu.pipeline_mode<synchronous>, transform_indices = @transform_15, window_bounds = array<i64: 128, 32>}, {pipeline_mode = #tpu.pipeline_mode<synchronous>, transform_indices = @transform_16, window_bounds = array<i64: 1, 32>}, {pipeline_mode = #tpu.pipeline_mode<synchronous>, transform_indices = @transform_17, window_bounds = array<i64: 8, 32>}, {pipeline_mode = #tpu.pipeline_mode<synchronous>, transform_indices = @transform_18, window_bounds = array<i64: 32, 1>}, {pipeline_mode = #tpu.pipeline_mode<synchronous>, transform_indices = @transform_19, window_bounds = array<i64: 1, 32>}, {pipeline_mode = #tpu.pipeline_mode<synchronous>, transform_indices = @transform_20, window_bounds = array<i64: 1, 32>}, {pipeline_mode = #tpu.pipeline_mode<synchronous>, transform_indices = @transform_21, window_bounds = array<i64: 1, 32>}, {pipeline_mode = #tpu.pipeline_mode<synchronous>, transform_indices = @transform_22, window_bounds = array<i64: 32, 128>}, {pipeline_mode = #tpu.pipeline_mode<synchronous>, transform_indices = @transform_23, window_bounds = array<i64: 1, 128>}, {pipeline_mode = #tpu.pipeline_mode<synchronous>, transform_indices = @transform_24, window_bounds = array<i64: 8, 128>}]} {
    %0 = tpu.iota {dimensions = array<i32: 1>} : vector<16x8xi32>
    %c0 = arith.constant 0 : index
    %c0_0 = arith.constant 0 : index
    %1 = vector.load %arg3[%c0, %c0_0] : memref<16x1xi32, #tpu.memory_space<vmem>>, vector<16x1xi32>
    %2 = vector.broadcast %1 : vector<16x1xi32> to vector<16x8xi32>
    %3 = arith.cmpi eq, %0, %2 : vector<16x8xi32>
    %4 = arith.extui %3 : vector<16x8xi1> to vector<16x8xi32>
    %5 = arith.sitofp %4 : vector<16x8xi32> to vector<16x8xf32>
    %6 = arith.truncf %5 : vector<16x8xf32> to vector<16x8xbf16>
    %c0_1 = arith.constant 0 : index
    %c0_2 = arith.constant 0 : index
    %7 = vector.load %arg4[%c0_1, %c0_2] : memref<16x1xi32, #tpu.memory_space<vmem>>, vector<16x1xi32>
    %8 = vector.broadcast %7 : vector<16x1xi32> to vector<16x8xi32>
    %9 = arith.cmpi eq, %0, %8 : vector<16x8xi32>
    %10 = arith.extui %9 : vector<16x8xi1> to vector<16x8xi32>
    %11 = arith.sitofp %10 : vector<16x8xi32> to vector<16x8xf32>
    %12 = arith.truncf %11 : vector<16x8xf32> to vector<16x8xbf16>
    %cst = arith.constant 1.000000e+00 : f32
    %13 = vector.broadcast %cst : f32 to vector<16x8xf32>
    %14 = arith.subf %13, %11 : vector<16x8xf32>
    %cst_3 = arith.constant 1.000000e+30 : f32
    %15 = vector.broadcast %cst_3 : f32 to vector<16x8xf32>
    %16 = arith.mulf %14, %15 : vector<16x8xf32>
    %c0_4 = arith.constant 0 : index
    %c0_5 = arith.constant 0 : index
    %17 = vector.load %arg2[%c0_4, %c0_5] : memref<16x8xf32, #tpu.memory_space<vmem>>, vector<16x8xf32>
    %c0_6 = arith.constant 0 : index
    %c0_7 = arith.constant 0 : index
    %18 = vector.load %arg1[%c0_6, %c0_7] : memref<8x16xf32, #tpu.memory_space<vmem>>, vector<8x16xf32>
    %c0_8 = arith.constant 0 : index
    %c0_9 = arith.constant 0 : index
    %19 = vector.load %arg5[%c0_8, %c0_9] : memref<16x32xf32, #tpu.memory_space<vmem>>, vector<16x32xf32>
    %cst_10 = arith.constant dense<0.000000e+00> : vector<8x32xf32>
    %20 = tpu.matmul %18, %19, %cst_10 {dimension_numbers = #tpu.dot_dimension_numbers<[1], [0], [0], [1], [0, 0, 1, 1], [], []>} : vector<8x16xf32>, vector<16x32xf32>, vector<8x32xf32> -> vector<8x32xf32>
    %c0_11 = arith.constant 0 : index
    %c0_12 = arith.constant 0 : index
    %21 = vector.load %arg6[%c0_11, %c0_12] : memref<1x32xf32, #tpu.memory_space<vmem>>, vector<1x32xf32>
    %22 = vector.broadcast %21 : vector<1x32xf32> to vector<8x32xf32>
    %23 = arith.addf %20, %22 : vector<8x32xf32>
    %cst_13 = arith.constant 0.000000e+00 : f32
    %24 = vector.broadcast %cst_13 : f32 to vector<8x32xf32>
    %25 = arith.maximumf %23, %24 : vector<8x32xf32>
    %c0_14 = arith.constant 0 : index
    %c0_15 = arith.constant 0 : index
    %26 = vector.load %arg7[%c0_14, %c0_15] : memref<32x384xf32, #tpu.memory_space<vmem>>, vector<32x384xf32>
    %cst_16 = arith.constant dense<0.000000e+00> : vector<8x384xf32>
    %27 = tpu.matmul %25, %26, %cst_16 {dimension_numbers = #tpu.dot_dimension_numbers<[1], [0], [0], [1], [0, 0, 1, 1], [], []>} : vector<8x32xf32>, vector<32x384xf32>, vector<8x384xf32> -> vector<8x384xf32>
    %c0_17 = arith.constant 0 : index
    %c0_18 = arith.constant 0 : index
    %28 = vector.load %arg8[%c0_17, %c0_18] : memref<1x384xf32, #tpu.memory_space<vmem>>, vector<1x384xf32>
    %29 = vector.broadcast %28 : vector<1x384xf32> to vector<8x384xf32>
    %30 = arith.addf %27, %29 : vector<8x384xf32>
    %31 = vector.extract_strided_slice %30 {offsets = [0, 0], sizes = [8, 128], strides = [1, 1]} : vector<8x384xf32> to vector<8x128xf32>
    %32 = vector.extract_strided_slice %30 {offsets = [0, 128], sizes = [8, 128], strides = [1, 1]} : vector<8x384xf32> to vector<8x128xf32>
    %33 = vector.extract_strided_slice %30 {offsets = [0, 256], sizes = [8, 128], strides = [1, 1]} : vector<8x384xf32> to vector<8x128xf32>
    %c0_19 = arith.constant 0 : index
    %c0_20 = arith.constant 0 : index
    %34 = vector.load %arg9[%c0_19, %c0_20] : memref<8x128xf32, #tpu.memory_space<vmem>>, vector<8x128xf32>
    %cst_21 = arith.constant dense<0.000000e+00> : vector<16x128xf32>
    %35 = tpu.matmul %17, %34, %cst_21 {dimension_numbers = #tpu.dot_dimension_numbers<[1], [0], [0], [1], [0, 0, 1, 1], [], []>} : vector<16x8xf32>, vector<8x128xf32>, vector<16x128xf32> -> vector<16x128xf32>
    %c0_22 = arith.constant 0 : index
    %c0_23 = arith.constant 0 : index
    %36 = vector.load %arg10[%c0_22, %c0_23] : memref<128x4xf32, #tpu.memory_space<vmem>>, vector<128x4xf32>
    %37 = arith.truncf %31 : vector<8x128xf32> to vector<8x128xbf16>
    %cst_24 = arith.constant dense<0.000000e+00> : vector<16x128xf32>
    %38 = tpu.matmul %6, %37, %cst_24 {dimension_numbers = #tpu.dot_dimension_numbers<[1], [0], [0], [1], [0, 0, 1, 1], [], []>} : vector<16x8xbf16>, vector<8x128xbf16>, vector<16x128xf32> -> vector<16x128xf32>
    %39 = arith.truncf %32 : vector<8x128xf32> to vector<8x128xbf16>
    %cst_25 = arith.constant dense<0.000000e+00> : vector<16x128xf32>
    %40 = tpu.matmul %12, %39, %cst_25 {dimension_numbers = #tpu.dot_dimension_numbers<[1], [0], [0], [1], [0, 0, 1, 1], [], []>} : vector<16x8xbf16>, vector<8x128xbf16>, vector<16x128xf32> -> vector<16x128xf32>
    %41 = arith.addf %38, %40 : vector<16x128xf32>
    %42 = arith.addf %41, %35 : vector<16x128xf32>
    %cst_26 = arith.constant 0.000000e+00 : f32
    %43 = vector.broadcast %cst_26 : f32 to vector<16x128xf32>
    %44 = arith.cmpf ogt, %42, %43 : vector<16x128xf32>
    %cst_27 = arith.constant 2.000000e-01 : f32
    %45 = vector.broadcast %cst_27 : f32 to vector<16x128xf32>
    %46 = arith.mulf %45, %42 : vector<16x128xf32>
    %47 = arith.select %44, %42, %46 : vector<16x128xi1>, vector<16x128xf32>
    %cst_28 = arith.constant dense<0.000000e+00> : vector<16x4xf32>
    %48 = tpu.matmul %47, %36, %cst_28 {dimension_numbers = #tpu.dot_dimension_numbers<[1], [0], [0], [1], [0, 0, 1, 1], [], []>} : vector<16x128xf32>, vector<128x4xf32>, vector<16x4xf32> -> vector<16x4xf32>
    %49 = vector.extract_strided_slice %48 {offsets = [0, 0], sizes = [16, 1], strides = [1, 1]} : vector<16x4xf32> to vector<16x1xf32>
    %50 = vector.broadcast %49 : vector<16x1xf32> to vector<16x8xf32>
    %51 = arith.subf %50, %16 : vector<16x8xf32>
    %cst_29 = arith.constant dense<0xFF800000> : vector<8xf32>
    %52 = vector.multi_reduction <maximumf>, %51, %cst_29 [0] : vector<16x8xf32> to vector<8xf32>
    %53 = vector.shape_cast %52 : vector<8xf32> to vector<1x8xf32>
    %54 = vector.extract_strided_slice %48 {offsets = [0, 1], sizes = [16, 1], strides = [1, 1]} : vector<16x4xf32> to vector<16x1xf32>
    %55 = vector.broadcast %54 : vector<16x1xf32> to vector<16x8xf32>
    %56 = arith.subf %55, %16 : vector<16x8xf32>
    %cst_30 = arith.constant dense<0xFF800000> : vector<8xf32>
    %57 = vector.multi_reduction <maximumf>, %56, %cst_30 [0] : vector<16x8xf32> to vector<8xf32>
    %58 = vector.shape_cast %57 : vector<8xf32> to vector<1x8xf32>
    %59 = vector.extract_strided_slice %48 {offsets = [0, 2], sizes = [16, 1], strides = [1, 1]} : vector<16x4xf32> to vector<16x1xf32>
    %60 = vector.broadcast %59 : vector<16x1xf32> to vector<16x8xf32>
    %61 = arith.subf %60, %16 : vector<16x8xf32>
    %cst_31 = arith.constant dense<0xFF800000> : vector<8xf32>
    %62 = vector.multi_reduction <maximumf>, %61, %cst_31 [0] : vector<16x8xf32> to vector<8xf32>
    %63 = vector.shape_cast %62 : vector<8xf32> to vector<1x8xf32>
    %64 = vector.extract_strided_slice %48 {offsets = [0, 3], sizes = [16, 1], strides = [1, 1]} : vector<16x4xf32> to vector<16x1xf32>
    %65 = vector.broadcast %64 : vector<16x1xf32> to vector<16x8xf32>
    %66 = arith.subf %65, %16 : vector<16x8xf32>
    %cst_32 = arith.constant dense<0xFF800000> : vector<8xf32>
    %67 = vector.multi_reduction <maximumf>, %66, %cst_32 [0] : vector<16x8xf32> to vector<8xf32>
    %68 = vector.shape_cast %67 : vector<8xf32> to vector<1x8xf32>
    %69 = tpu.concatenate %53, %58, %63, %68 in 0 : vector<1x8xf32>, vector<1x8xf32>, vector<1x8xf32>, vector<1x8xf32> -> vector<4x8xf32>
    %cst_33 = arith.constant dense<0.000000e+00> : vector<16x4xf32>
    %70 = tpu.matmul %11, %69, %cst_33 {dimension_numbers = #tpu.dot_dimension_numbers<[1], [1], [0], [0], [0, 0, 1, 0], [], []>} : vector<16x8xf32>, vector<4x8xf32>, vector<16x4xf32> -> vector<16x4xf32>
    %71 = arith.subf %48, %70 : vector<16x4xf32>
    %72 = math.exp %71 : vector<16x4xf32>
    %cst_34 = arith.constant dense<0.000000e+00> : vector<8x4xf32>
    %73 = tpu.matmul %11, %72, %cst_34 {dimension_numbers = #tpu.dot_dimension_numbers<[0], [0], [1], [1], [0, 1, 1, 1], [], []>} : vector<16x8xf32>, vector<16x4xf32>, vector<8x4xf32> -> vector<8x4xf32>
    %cst_35 = arith.constant dense<0.000000e+00> : vector<16x4xf32>
    %74 = tpu.matmul %11, %73, %cst_35 {dimension_numbers = #tpu.dot_dimension_numbers<[1], [0], [0], [1], [0, 0, 1, 1], [], []>} : vector<16x8xf32>, vector<8x4xf32>, vector<16x4xf32> -> vector<16x4xf32>
    %cst_36 = arith.constant 9.99999971E-10 : f32
    %75 = vector.broadcast %cst_36 : f32 to vector<16x4xf32>
    %76 = arith.addf %74, %75 : vector<16x4xf32>
    %77 = tpu.reciprocal %76 {approx = true} : vector<16x4xf32> -> vector<16x4xf32>
    %78 = arith.mulf %72, %77 : vector<16x4xf32>
    %79 = vector.shape_cast %78 : vector<16x4xf32> to vector<16x4x1xf32>
    %80 = vector.shape_cast %79 : vector<16x4x1xf32> to vector<16x4x1xf32>
    %81 = vector.broadcast %80 : vector<16x4x1xf32> to vector<16x4x32xf32>
    %82 = vector.shape_cast %81 : vector<16x4x32xf32> to vector<16x128xf32>
    %83 = arith.mulf %38, %82 : vector<16x128xf32>
    %84 = arith.truncf %83 : vector<16x128xf32> to vector<16x128xbf16>
    %cst_37 = arith.constant dense<0.000000e+00> : vector<8x128xf32>
    %85 = tpu.matmul %12, %84, %cst_37 {dimension_numbers = #tpu.dot_dimension_numbers<[0], [0], [1], [1], [0, 1, 1, 1], [], []>} : vector<16x8xbf16>, vector<16x128xbf16>, vector<8x128xf32> -> vector<8x128xf32>
    %c0_38 = arith.constant 0 : index
    %c0_39 = arith.constant 0 : index
    %86 = vector.load %arg11[%c0_38, %c0_39] : memref<1x128xf32, #tpu.memory_space<vmem>>, vector<1x128xf32>
    %87 = vector.broadcast %86 : vector<1x128xf32> to vector<8x128xf32>
    %88 = arith.addf %85, %87 : vector<8x128xf32>
    %89 = arith.addf %88, %33 : vector<8x128xf32>
    %c0_40 = arith.constant 0 : index
    %c0_41 = arith.constant 0 : index
    %90 = vector.load %arg12[%c0_40, %c0_41] : memref<1x128xf32, #tpu.memory_space<vmem>>, vector<1x128xf32>
    %91 = vector.broadcast %90 : vector<1x128xf32> to vector<8x128xf32>
    %92 = arith.mulf %89, %91 : vector<8x128xf32>
    %c0_42 = arith.constant 0 : index
    %c0_43 = arith.constant 0 : index
    %93 = vector.load %arg13[%c0_42, %c0_43] : memref<1x128xf32, #tpu.memory_space<vmem>>, vector<1x128xf32>
    %94 = vector.broadcast %93 : vector<1x128xf32> to vector<8x128xf32>
    %95 = arith.addf %92, %94 : vector<8x128xf32>
    %cst_44 = arith.constant 0.000000e+00 : f32
    %96 = vector.broadcast %cst_44 : f32 to vector<8x128xf32>
    %97 = arith.maximumf %95, %96 : vector<8x128xf32>
    %c0_45 = arith.constant 0 : index
    %c0_46 = arith.constant 0 : index
    %98 = vector.load %arg14[%c0_45, %c0_46] : memref<128x32xf32, #tpu.memory_space<vmem>>, vector<128x32xf32>
    %cst_47 = arith.constant dense<0.000000e+00> : vector<8x32xf32>
    %99 = tpu.matmul %97, %98, %cst_47 {dimension_numbers = #tpu.dot_dimension_numbers<[1], [0], [0], [1], [0, 0, 1, 1], [], []>} : vector<8x128xf32>, vector<128x32xf32>, vector<8x32xf32> -> vector<8x32xf32>
    %c0_48 = arith.constant 0 : index
    %c0_49 = arith.constant 0 : index
    %100 = vector.load %arg15[%c0_48, %c0_49] : memref<1x32xf32, #tpu.memory_space<vmem>>, vector<1x32xf32>
    %101 = vector.broadcast %100 : vector<1x32xf32> to vector<8x32xf32>
    %102 = arith.addf %99, %101 : vector<8x32xf32>
    %c0_50 = arith.constant 0 : index
    %c0_51 = arith.constant 0 : index
    %103 = vector.load %arg16[%c0_50, %c0_51] : memref<128x32xf32, #tpu.memory_space<vmem>>, vector<128x32xf32>
    %cst_52 = arith.constant dense<0.000000e+00> : vector<8x32xf32>
    %104 = tpu.matmul %97, %103, %cst_52 {dimension_numbers = #tpu.dot_dimension_numbers<[1], [0], [0], [1], [0, 0, 1, 1], [], []>} : vector<8x128xf32>, vector<128x32xf32>, vector<8x32xf32> -> vector<8x32xf32>
    %c0_53 = arith.constant 0 : index
    %c0_54 = arith.constant 0 : index
    %105 = vector.load %arg17[%c0_53, %c0_54] : memref<1x32xf32, #tpu.memory_space<vmem>>, vector<1x32xf32>
    %106 = vector.broadcast %105 : vector<1x32xf32> to vector<8x32xf32>
    %107 = arith.addf %104, %106 : vector<8x32xf32>
    %c0_55 = arith.constant 0 : index
    %c0_56 = arith.constant 0 : index
    %108 = vector.load %arg18[%c0_55, %c0_56] : memref<8x32xf32, #tpu.memory_space<vmem>>, vector<8x32xf32>
    %cst_57 = arith.constant dense<0.000000e+00> : vector<16x32xf32>
    %109 = tpu.matmul %17, %108, %cst_57 {dimension_numbers = #tpu.dot_dimension_numbers<[1], [0], [0], [1], [0, 0, 1, 1], [], []>} : vector<16x8xf32>, vector<8x32xf32>, vector<16x32xf32> -> vector<16x32xf32>
    %c0_58 = arith.constant 0 : index
    %c0_59 = arith.constant 0 : index
    %110 = vector.load %arg19[%c0_58, %c0_59] : memref<32x1xf32, #tpu.memory_space<vmem>>, vector<32x1xf32>
    %111 = arith.truncf %102 : vector<8x32xf32> to vector<8x32xbf16>
    %cst_60 = arith.constant dense<0.000000e+00> : vector<16x32xf32>
    %112 = tpu.matmul %6, %111, %cst_60 {dimension_numbers = #tpu.dot_dimension_numbers<[1], [0], [0], [1], [0, 0, 1, 1], [], []>} : vector<16x8xbf16>, vector<8x32xbf16>, vector<16x32xf32> -> vector<16x32xf32>
    %113 = arith.truncf %107 : vector<8x32xf32> to vector<8x32xbf16>
    %cst_61 = arith.constant dense<0.000000e+00> : vector<16x32xf32>
    %114 = tpu.matmul %12, %113, %cst_61 {dimension_numbers = #tpu.dot_dimension_numbers<[1], [0], [0], [1], [0, 0, 1, 1], [], []>} : vector<16x8xbf16>, vector<8x32xbf16>, vector<16x32xf32> -> vector<16x32xf32>
    %115 = arith.addf %112, %114 : vector<16x32xf32>
    %116 = arith.addf %115, %109 : vector<16x32xf32>
    %cst_62 = arith.constant 0.000000e+00 : f32
    %117 = vector.broadcast %cst_62 : f32 to vector<16x32xf32>
    %118 = arith.cmpf ogt, %116, %117 : vector<16x32xf32>
    %cst_63 = arith.constant 2.000000e-01 : f32
    %119 = vector.broadcast %cst_63 : f32 to vector<16x32xf32>
    %120 = arith.mulf %119, %116 : vector<16x32xf32>
    %121 = arith.select %118, %116, %120 : vector<16x32xi1>, vector<16x32xf32>
    %cst_64 = arith.constant dense<0.000000e+00> : vector<16x1xf32>
    %122 = tpu.matmul %121, %110, %cst_64 {dimension_numbers = #tpu.dot_dimension_numbers<[1], [0], [0], [1], [0, 0, 1, 1], [], []>} : vector<16x32xf32>, vector<32x1xf32>, vector<16x1xf32> -> vector<16x1xf32>
    %123 = vector.broadcast %122 : vector<16x1xf32> to vector<16x8xf32>
    %124 = arith.subf %123, %16 : vector<16x8xf32>
    %cst_65 = arith.constant dense<0xFF800000> : vector<8xf32>
    %125 = vector.multi_reduction <maximumf>, %124, %cst_65 [0] : vector<16x8xf32> to vector<8xf32>
    %126 = vector.shape_cast %125 : vector<8xf32> to vector<1x8xf32>
    %cst_66 = arith.constant dense<0.000000e+00> : vector<16x1xf32>
    %127 = tpu.matmul %11, %126, %cst_66 {dimension_numbers = #tpu.dot_dimension_numbers<[1], [1], [0], [0], [0, 0, 1, 0], [], []>} : vector<16x8xf32>, vector<1x8xf32>, vector<16x1xf32> -> vector<16x1xf32>
    %128 = arith.subf %122, %127 : vector<16x1xf32>
    %129 = math.exp %128 : vector<16x1xf32>
    %cst_67 = arith.constant dense<0.000000e+00> : vector<8x1xf32>
    %130 = tpu.matmul %11, %129, %cst_67 {dimension_numbers = #tpu.dot_dimension_numbers<[0], [0], [1], [1], [0, 1, 1, 1], [], []>} : vector<16x8xf32>, vector<16x1xf32>, vector<8x1xf32> -> vector<8x1xf32>
    %cst_68 = arith.constant dense<0.000000e+00> : vector<16x1xf32>
    %131 = tpu.matmul %11, %130, %cst_68 {dimension_numbers = #tpu.dot_dimension_numbers<[1], [0], [0], [1], [0, 0, 1, 1], [], []>} : vector<16x8xf32>, vector<8x1xf32>, vector<16x1xf32> -> vector<16x1xf32>
    %cst_69 = arith.constant 9.99999971E-10 : f32
    %132 = vector.broadcast %cst_69 : f32 to vector<16x1xf32>
    %133 = arith.addf %131, %132 : vector<16x1xf32>
    %134 = tpu.reciprocal %133 {approx = true} : vector<16x1xf32> -> vector<16x1xf32>
    %135 = arith.mulf %129, %134 : vector<16x1xf32>
    %136 = vector.broadcast %135 : vector<16x1xf32> to vector<16x32xf32>
    %137 = arith.mulf %112, %136 : vector<16x32xf32>
    %138 = arith.truncf %137 : vector<16x32xf32> to vector<16x32xbf16>
    %cst_70 = arith.constant dense<0.000000e+00> : vector<8x32xf32>
    %139 = tpu.matmul %12, %138, %cst_70 {dimension_numbers = #tpu.dot_dimension_numbers<[0], [0], [1], [1], [0, 1, 1, 1], [], []>} : vector<16x8xbf16>, vector<16x32xbf16>, vector<8x32xf32> -> vector<8x32xf32>
    %c0_71 = arith.constant 0 : index
    %c0_72 = arith.constant 0 : index
    %140 = vector.load %arg20[%c0_71, %c0_72] : memref<1x32xf32, #tpu.memory_space<vmem>>, vector<1x32xf32>
    %141 = vector.broadcast %140 : vector<1x32xf32> to vector<8x32xf32>
    %142 = arith.addf %139, %141 : vector<8x32xf32>
    %c0_73 = arith.constant 0 : index
    %c0_74 = arith.constant 0 : index
    %143 = vector.load %arg21[%c0_73, %c0_74] : memref<1x32xf32, #tpu.memory_space<vmem>>, vector<1x32xf32>
    %144 = vector.broadcast %143 : vector<1x32xf32> to vector<8x32xf32>
    %145 = arith.mulf %142, %144 : vector<8x32xf32>
    %c0_75 = arith.constant 0 : index
    %c0_76 = arith.constant 0 : index
    %146 = vector.load %arg22[%c0_75, %c0_76] : memref<1x32xf32, #tpu.memory_space<vmem>>, vector<1x32xf32>
    %147 = vector.broadcast %146 : vector<1x32xf32> to vector<8x32xf32>
    %148 = arith.addf %145, %147 : vector<8x32xf32>
    %cst_77 = arith.constant 0.000000e+00 : f32
    %149 = vector.broadcast %cst_77 : f32 to vector<8x32xf32>
    %150 = arith.maximumf %148, %149 : vector<8x32xf32>
    %c0_78 = arith.constant 0 : index
    %c0_79 = arith.constant 0 : index
    %151 = vector.load %arg23[%c0_78, %c0_79] : memref<32x128xf32, #tpu.memory_space<vmem>>, vector<32x128xf32>
    %cst_80 = arith.constant dense<0.000000e+00> : vector<8x128xf32>
    %152 = tpu.matmul %150, %151, %cst_80 {dimension_numbers = #tpu.dot_dimension_numbers<[1], [0], [0], [1], [0, 0, 1, 1], [], []>} : vector<8x32xf32>, vector<32x128xf32>, vector<8x128xf32> -> vector<8x128xf32>
    %c0_81 = arith.constant 0 : index
    %c0_82 = arith.constant 0 : index
    %153 = vector.load %arg24[%c0_81, %c0_82] : memref<1x128xf32, #tpu.memory_space<vmem>>, vector<1x128xf32>
    %154 = vector.broadcast %153 : vector<1x128xf32> to vector<8x128xf32>
    %155 = arith.addf %152, %154 : vector<8x128xf32>
    %c0_83 = arith.constant 0 : index
    %c0_84 = arith.constant 0 : index
    %156 = vector.load %arg25[%c0_83, %c0_84] : memref<8x128xf32, #tpu.memory_space<vmem>>, vector<8x128xf32>
    tpu.vector_store %arg25[%c0_83, %c0_84], %155 {strides = array<i32>} : memref<8x128xf32, #tpu.memory_space<vmem>>, vector<8x128xf32>,
    return
  }
  func.func @transform_0(%arg0: i32) -> (i32, i32) {
    %c0_i32 = arith.constant 0 : i32
    %c0_i32_0 = arith.constant 0 : i32
    %c0_i32_1 = arith.constant 0 : i32
    return %c0_i32, %c0_i32_0 : i32, i32
  }
  func.func @transform_1(%arg0: i32) -> (i32, i32) {
    %c0_i32 = arith.constant 0 : i32
    %c0_i32_0 = arith.constant 0 : i32
    %c0_i32_1 = arith.constant 0 : i32
    return %c0_i32, %c0_i32_0 : i32, i32
  }
  func.func @transform_2(%arg0: i32) -> (i32, i32) {
    %c0_i32 = arith.constant 0 : i32
    %c0_i32_0 = arith.constant 0 : i32
    %c0_i32_1 = arith.constant 0 : i32
    return %c0_i32, %c0_i32_0 : i32, i32
  }
  func.func @transform_3(%arg0: i32) -> (i32, i32) {
    %c0_i32 = arith.constant 0 : i32
    %c0_i32_0 = arith.constant 0 : i32
    %c0_i32_1 = arith.constant 0 : i32
    return %c0_i32, %c0_i32_0 : i32, i32
  }
  func.func @transform_4(%arg0: i32) -> (i32, i32) {
    %c0_i32 = arith.constant 0 : i32
    %c0_i32_0 = arith.constant 0 : i32
    %c0_i32_1 = arith.constant 0 : i32
    return %c0_i32, %c0_i32_0 : i32, i32
  }
  func.func @transform_5(%arg0: i32) -> (i32, i32) {
    %c0_i32 = arith.constant 0 : i32
    %c0_i32_0 = arith.constant 0 : i32
    %c0_i32_1 = arith.constant 0 : i32
    return %c0_i32, %c0_i32_0 : i32, i32
  }
  func.func @transform_6(%arg0: i32) -> (i32, i32) {
    %c0_i32 = arith.constant 0 : i32
    %c0_i32_0 = arith.constant 0 : i32
    %c0_i32_1 = arith.constant 0 : i32
    return %c0_i32, %c0_i32_0 : i32, i32
  }
  func.func @transform_7(%arg0: i32) -> (i32, i32) {
    %c0_i32 = arith.constant 0 : i32
    %c0_i32_0 = arith.constant 0 : i32
    %c0_i32_1 = arith.constant 0 : i32
    return %c0_i32, %c0_i32_0 : i32, i32
  }
  func.func @transform_8(%arg0: i32) -> (i32, i32) {
    %c0_i32 = arith.constant 0 : i32
    %c0_i32_0 = arith.constant 0 : i32
    %c0_i32_1 = arith.constant 0 : i32
    return %c0_i32, %c0_i32_0 : i32, i32
  }
  func.func @transform_9(%arg0: i32) -> (i32, i32) {
    %c0_i32 = arith.constant 0 : i32
    %c0_i32_0 = arith.constant 0 : i32
    %c0_i32_1 = arith.constant 0 : i32
    return %c0_i32, %c0_i32_0 : i32, i32
  }
  func.func @transform_10(%arg0: i32) -> (i32, i32) {
    %c0_i32 = arith.constant 0 : i32
    %c0_i32_0 = arith.constant 0 : i32
    %c0_i32_1 = arith.constant 0 : i32
    return %c0_i32, %c0_i32_0 : i32, i32
  }
  func.func @transform_11(%arg0: i32) -> (i32, i32) {
    %c0_i32 = arith.constant 0 : i32
    %c0_i32_0 = arith.constant 0 : i32
    %c0_i32_1 = arith.constant 0 : i32
    return %c0_i32, %c0_i32_0 : i32, i32
  }
  func.func @transform_12(%arg0: i32) -> (i32, i32) {
    %c0_i32 = arith.constant 0 : i32
    %c0_i32_0 = arith.constant 0 : i32
    %c0_i32_1 = arith.constant 0 : i32
    return %c0_i32, %c0_i32_0 : i32, i32
  }
  func.func @transform_13(%arg0: i32) -> (i32, i32) {
    %c0_i32 = arith.constant 0 : i32
    %c0_i32_0 = arith.constant 0 : i32
    %c0_i32_1 = arith.constant 0 : i32
    return %c0_i32, %c0_i32_0 : i32, i32
  }
  func.func @transform_14(%arg0: i32) -> (i32, i32) {
    %c0_i32 = arith.constant 0 : i32
    %c0_i32_0 = arith.constant 0 : i32
    %c0_i32_1 = arith.constant 0 : i32
    return %c0_i32, %c0_i32_0 : i32, i32
  }
  func.func @transform_15(%arg0: i32) -> (i32, i32) {
    %c0_i32 = arith.constant 0 : i32
    %c0_i32_0 = arith.constant 0 : i32
    %c0_i32_1 = arith.constant 0 : i32
    return %c0_i32, %c0_i32_0 : i32, i32
  }
  func.func @transform_16(%arg0: i32) -> (i32, i32) {
    %c0_i32 = arith.constant 0 : i32
    %c0_i32_0 = arith.constant 0 : i32
    %c0_i32_1 = arith.constant 0 : i32
    return %c0_i32, %c0_i32_0 : i32, i32
  }
  func.func @transform_17(%arg0: i32) -> (i32, i32) {
    %c0_i32 = arith.constant 0 : i32
    %c0_i32_0 = arith.constant 0 : i32
    %c0_i32_1 = arith.constant 0 : i32
    return %c0_i32, %c0_i32_0 : i32, i32
  }
  func.func @transform_18(%arg0: i32) -> (i32, i32) {
    %c0_i32 = arith.constant 0 : i32
    %c0_i32_0 = arith.constant 0 : i32
    %c0_i32_1 = arith.constant 0 : i32
    return %c0_i32, %c0_i32_0 : i32, i32
  }
  func.func @transform_19(%arg0: i32) -> (i32, i32) {
    %c0_i32 = arith.constant 0 : i32
    %c0_i32_0 = arith.constant 0 : i32
    %c0_i32_1 = arith.constant 0 : i32
    return %c0_i32, %c0_i32_0 : i32, i32
  }
  func.func @transform_20(%arg0: i32) -> (i32, i32) {
    %c0_i32 = arith.constant 0 : i32
    %c0_i32_0 = arith.constant 0 : i32
    %c0_i32_1 = arith.constant 0 : i32
    return %c0_i32, %c0_i32_0 : i32, i32
  }
  func.func @transform_21(%arg0: i32) -> (i32, i32) {
    %c0_i32 = arith.constant 0 : i32
    %c0_i32_0 = arith.constant 0 : i32
    %c0_i32_1 = arith.constant 0 : i32
    return %c0_i32, %c0_i32_0 : i32, i32
  }
  func.func @transform_22(%arg0: i32) -> (i32, i32) {
    %c0_i32 = arith.constant 0 : i32
    %c0_i32_0 = arith.constant 0 : i32
    %c0_i32_1 = arith.constant 0 : i32
    return %c0_i32, %c0_i32_0 : i32, i32
  }
  func.func @transform_23(%arg0: i32) -> (i32, i32) {
    %c0_i32 = arith.constant 0 : i32
    %c0_i32_0 = arith.constant 0 : i32
    %c0_i32_1 = arith.constant 0 : i32
    return %c0_i32, %c0_i32_0 : i32, i32
  }
  func.func @transform_24(%arg0: i32) -> (i32, i32) {
    %c0_i32 = arith.constant 0 : i32
    %c0_i32_0 = arith.constant 0 : i32
    %c0_i32_1 = arith.constant 0 : i32
    return %c0_i32, %c0_i32_0 : i32, i32
  }
}

</mosaic_0001>

<llo_original>
// kernel: tpu_custom_call.1
$region0: #{tpu_custom_call.1}
  #allocation0 [shape = 'u32[]', space=smem, size = 0x4, offset = 0x4, fixed_abs, tag = 'smem constant byte address 0x4 - core index']
  #allocation1 [shape = 'u32[72,128]{1,0:T(1,128)}', space=vmem, size = 0x9000, scoped, tag = 'internal scratch']
  %s0 = inlined_call_operand.vmem [shape: f32[8,16], index: 0, kind: input, shape index: {}]
  %s1 = inlined_call_operand.vmem [shape: f32[16,8], index: 1, kind: input, shape index: {}]
  %s2 = inlined_call_operand.vmem [shape: s32[16,1], index: 2, kind: input, shape index: {}]
  %s3 = inlined_call_operand.vmem [shape: s32[16,1], index: 3, kind: input, shape index: {}]
  %s4 = inlined_call_operand.vmem [shape: f32[16,32], index: 4, kind: input, shape index: {}]
  %s5 = inlined_call_operand.vmem [shape: f32[1,32], index: 5, kind: input, shape index: {}]
  %s6 = inlined_call_operand.vmem [shape: f32[32,384], index: 6, kind: input, shape index: {}]
  %s7 = inlined_call_operand.vmem [shape: f32[1,384], index: 7, kind: input, shape index: {}]
  %s8 = inlined_call_operand.vmem [shape: f32[8,128], index: 8, kind: input, shape index: {}]
  %s9 = inlined_call_operand.vmem [shape: f32[128,4], index: 9, kind: input, shape index: {}]
  %s10 = inlined_call_operand.vmem [shape: f32[1,128], index: 10, kind: input, shape index: {}]
  %s11 = inlined_call_operand.vmem [shape: f32[1,128], index: 11, kind: input, shape index: {}]
  %s12 = inlined_call_operand.vmem [shape: f32[1,128], index: 12, kind: input, shape index: {}]
  %s13 = inlined_call_operand.vmem [shape: f32[128,32], index: 13, kind: input, shape index: {}]
  %s14 = inlined_call_operand.vmem [shape: f32[1,32], index: 14, kind: input, shape index: {}]
  %s15 = inlined_call_operand.vmem [shape: f32[128,32], index: 15, kind: input, shape index: {}]
  %s16 = inlined_call_operand.vmem [shape: f32[1,32], index: 16, kind: input, shape index: {}]
  %s17 = inlined_call_operand.vmem [shape: f32[8,32], index: 17, kind: input, shape index: {}]
  %s18 = inlined_call_operand.vmem [shape: f32[32,1], index: 18, kind: input, shape index: {}]
  %s19 = inlined_call_operand.vmem [shape: f32[1,32], index: 19, kind: input, shape index: {}]
  %s20 = inlined_call_operand.vmem [shape: f32[1,32], index: 20, kind: input, shape index: {}]
  %s21 = inlined_call_operand.vmem [shape: f32[1,32], index: 21, kind: input, shape index: {}]
  %s22 = inlined_call_operand.vmem [shape: f32[32,128], index: 22, kind: input, shape index: {}]
  %s23 = inlined_call_operand.vmem [shape: f32[1,128], index: 23, kind: input, shape index: {}]
  %s24 = inlined_call_operand.hbm [shape: f32[8,128], index: 24, kind: output, shape index: {}]
  %s25 = sld [smem:[#allocation0]]
  $region106: #{tpu_custom_call.1} parent=0
    _
  %s27 = ssub.s32 1, %s25
  %s28 = scalar_select 0, %s27, %s25
  $region1: #{tpu_custom_call.1} parent=0
    #allocation2 [shape = 'u8[4096]{0}', space=vmem, size = 0x1000, scoped, tag = 'output window, operand 0, single buffered']
    #allocation3 [shape = 's32[1]{0}', space=sflag, size = 0x4, scoped, tag = 'scoped memory for tpu_custom_call.1']
    %29 = vsyncpa [#allocation3], 0
    // Predicated region
    $region2: #{tpu_custom_call.1} parent=1 // pred_check
      _
    $region3: #{tpu_custom_call.1} parent=1 // pred_check_branch
      %31 = sbr.rel (0) target = $region5
    $region4: #{tpu_custom_call.1} parent=1 // pred_region
      _
    $region5: #{tpu_custom_call.1} parent=1 // pred_fallthru
      _
    // Predicated region
    $region6: #{tpu_custom_call.1} parent=1 // pred_check
      _
    $region7: #{tpu_custom_call.1} parent=1 // pred_check_branch
      %33 = sbr.rel (0) target = $region9
    $region8: #{tpu_custom_call.1} parent=1 // pred_region
      _
    $region9: #{tpu_custom_call.1} parent=1 // pred_fallthru
      _
    // Predicated region
    $region10: #{tpu_custom_call.1} parent=1 // pred_check
      _
    $region11: #{tpu_custom_call.1} parent=1 // pred_check_branch
      %35 = sbr.rel (0) target = $region13
    $region12: #{tpu_custom_call.1} parent=1 // pred_region
      _
    $region13: #{tpu_custom_call.1} parent=1 // pred_fallthru
      _
    // Predicated region
    $region14: #{tpu_custom_call.1} parent=1 // pred_check
      _
    $region15: #{tpu_custom_call.1} parent=1 // pred_check_branch
      %37 = sbr.rel (0) target = $region17
    $region16: #{tpu_custom_call.1} parent=1 // pred_region
      _
    $region17: #{tpu_custom_call.1} parent=1 // pred_fallthru
      _
    // Predicated region
    $region18: #{tpu_custom_call.1} parent=1 // pred_check
      _
    $region19: #{tpu_custom_call.1} parent=1 // pred_check_branch
      %39 = sbr.rel (0) target = $region21
    $region20: #{tpu_custom_call.1} parent=1 // pred_region
      _
    $region21: #{tpu_custom_call.1} parent=1 // pred_fallthru
      _
    // Predicated region
    $region22: #{tpu_custom_call.1} parent=1 // pred_check
      _
    $region23: #{tpu_custom_call.1} parent=1 // pred_check_branch
      %41 = sbr.rel (0) target = $region25
    $region24: #{tpu_custom_call.1} parent=1 // pred_region
      _
    $region25: #{tpu_custom_call.1} parent=1 // pred_fallthru
      _
    // Predicated region
    $region26: #{tpu_custom_call.1} parent=1 // pred_check
      _
    $region27: #{tpu_custom_call.1} parent=1 // pred_check_branch
      %43 = sbr.rel (0) target = $region29
    $region28: #{tpu_custom_call.1} parent=1 // pred_region
      _
    $region29: #{tpu_custom_call.1} parent=1 // pred_fallthru
      _
    // Predicated region
    $region30: #{tpu_custom_call.1} parent=1 // pred_check
      _
    $region31: #{tpu_custom_call.1} parent=1 // pred_check_branch
      %45 = sbr.rel (0) target = $region33
    $region32: #{tpu_custom_call.1} parent=1 // pred_region
      _
    $region33: #{tpu_custom_call.1} parent=1 // pred_fallthru
      _
    // Predicated region
    $region34: #{tpu_custom_call.1} parent=1 // pred_check
      _
    $region35: #{tpu_custom_call.1} parent=1 // pred_check_branch
      %47 = sbr.rel (0) target = $region37
    $region36: #{tpu_custom_call.1} parent=1 // pred_region
      _
    $region37: #{tpu_custom_call.1} parent=1 // pred_fallthru
      _
    // Predicated region
    $region38: #{tpu_custom_call.1} parent=1 // pred_check
      _
    $region39: #{tpu_custom_call.1} parent=1 // pred_check_branch
      %49 = sbr.rel (0) target = $region41
    $region40: #{tpu_custom_call.1} parent=1 // pred_region
      _
    $region41: #{tpu_custom_call.1} parent=1 // pred_fallthru
      _
    // Predicated region
    $region42: #{tpu_custom_call.1} parent=1 // pred_check
      _
    $region43: #{tpu_custom_call.1} parent=1 // pred_check_branch
      %51 = sbr.rel (0) target = $region45
    $region44: #{tpu_custom_call.1} parent=1 // pred_region
      _
    $region45: #{tpu_custom_call.1} parent=1 // pred_fallthru
      _
    // Predicated region
    $region46: #{tpu_custom_call.1} parent=1 // pred_check
      _
    $region47: #{tpu_custom_call.1} parent=1 // pred_check_branch
      %53 = sbr.rel (0) target = $region49
    $region48: #{tpu_custom_call.1} parent=1 // pred_region
      _
    $region49: #{tpu_custom_call.1} parent=1 // pred_fallthru
      _
    // Predicated region
    $region50: #{tpu_custom_call.1} parent=1 // pred_check
      _
    $region51: #{tpu_custom_call.1} parent=1 // pred_check_branch
      %55 = sbr.rel (0) target = $region53
    $region52: #{tpu_custom_call.1} parent=1 // pred_region
      _
    $region53: #{tpu_custom_call.1} parent=1 // pred_fallthru
      _
    // Predicated region
    $region54: #{tpu_custom_call.1} parent=1 // pred_check
      _
    $region55: #{tpu_custom_call.1} parent=1 // pred_check_branch
      %57 = sbr.rel (0) target = $region57
    $region56: #{tpu_custom_call.1} parent=1 // pred_region
      _
    $region57: #{tpu_custom_call.1} parent=1 // pred_fallthru
      _
    // Predicated region
    $region58: #{tpu_custom_call.1} parent=1 // pred_check
      _
    $region59: #{tpu_custom_call.1} parent=1 // pred_check_branch
      %59 = sbr.rel (0) target = $region61
    $region60: #{tpu_custom_call.1} parent=1 // pred_region
      _
    $region61: #{tpu_custom_call.1} parent=1 // pred_fallthru
      _
    // Predicated region
    $region62: #{tpu_custom_call.1} parent=1 // pred_check
      _
    $region63: #{tpu_custom_call.1} parent=1 // pred_check_branch
      %61 = sbr.rel (0) target = $region65
    $region64: #{tpu_custom_call.1} parent=1 // pred_region
      _
    $region65: #{tpu_custom_call.1} parent=1 // pred_fallthru
      _
    // Predicated region
    $region66: #{tpu_custom_call.1} parent=1 // pred_check
      _
    $region67: #{tpu_custom_call.1} parent=1 // pred_check_branch
      %63 = sbr.rel (0) target = $region69
    $region68: #{tpu_custom_call.1} parent=1 // pred_region
      _
    $region69: #{tpu_custom_call.1} parent=1 // pred_fallthru
      _
    // Predicated region
    $region70: #{tpu_custom_call.1} parent=1 // pred_check
      _
    $region71: #{tpu_custom_call.1} parent=1 // pred_check_branch
      %65 = sbr.rel (0) target = $region73
    $region72: #{tpu_custom_call.1} parent=1 // pred_region
      _
    $region73: #{tpu_custom_call.1} parent=1 // pred_fallthru
      _
    // Predicated region
    $region74: #{tpu_custom_call.1} parent=1 // pred_check
      _
    $region75: #{tpu_custom_call.1} parent=1 // pred_check_branch
      %67 = sbr.rel (0) target = $region77
    $region76: #{tpu_custom_call.1} parent=1 // pred_region
      _
    $region77: #{tpu_custom_call.1} parent=1 // pred_fallthru
      _
    // Predicated region
    $region78: #{tpu_custom_call.1} parent=1 // pred_check
      _
    $region79: #{tpu_custom_call.1} parent=1 // pred_check_branch
      %69 = sbr.rel (0) target = $region81
    $region80: #{tpu_custom_call.1} parent=1 // pred_region
      _
    $region81: #{tpu_custom_call.1} parent=1 // pred_fallthru
      _
    // Predicated region
    $region82: #{tpu_custom_call.1} parent=1 // pred_check
      _
    $region83: #{tpu_custom_call.1} parent=1 // pred_check_branch
      %71 = sbr.rel (0) target = $region85
    $region84: #{tpu_custom_call.1} parent=1 // pred_region
      _
    $region85: #{tpu_custom_call.1} parent=1 // pred_fallthru
      _
    // Predicated region
    $region86: #{tpu_custom_call.1} parent=1 // pred_check
      _
    $region87: #{tpu_custom_call.1} parent=1 // pred_check_branch
      %73 = sbr.rel (0) target = $region89
    $region88: #{tpu_custom_call.1} parent=1 // pred_region
      _
    $region89: #{tpu_custom_call.1} parent=1 // pred_fallthru
      _
    // Predicated region
    $region90: #{tpu_custom_call.1} parent=1 // pred_check
      _
    $region91: #{tpu_custom_call.1} parent=1 // pred_check_branch
      %75 = sbr.rel (0) target = $region93
    $region92: #{tpu_custom_call.1} parent=1 // pred_region
      _
    $region93: #{tpu_custom_call.1} parent=1 // pred_fallthru
      _
    // Predicated region
    $region94: #{tpu_custom_call.1} parent=1 // pred_check
      _
    $region95: #{tpu_custom_call.1} parent=1 // pred_check_branch
      %77 = sbr.rel (0) target = $region97
    $region96: #{tpu_custom_call.1} parent=1 // pred_region
      _
    $region97: #{tpu_custom_call.1} parent=1 // pred_fallthru
      _
    %v79 = vlaneseq
    %v80 = vand.u32 %v79, 127
    %v81 = vld [vmem:[%s2] sm:$0xff]
    %v82 = vld [vmem:[%s2 + $0x8] sm:$0xff]
    %83 = vset.pattern.permute.xlu0 0
    %84 = vperm.xlu0 %83, %v81
    %v85 = vpop.permute.xlu0 %84
    %86 = vset.pattern.permute.xlu0 0
    %87 = vperm.xlu0 %86, %v82
    %v88 = vpop.permute.xlu0 %87
    %vm89 = vcmp.eq.s32.totalorder %v80, %v85
    %vm90 = vcmp.eq.s32.totalorder %v80, %v88
    %v91 = vsel %vm89, 1, 0
    %v92 = vsel %vm90, 1, 0
    %v93 = vcvt.s32.f32 %v91
    %v94 = vcvt.s32.f32 %v92
    %v95 = vpack.c.bf16 %v94, %v93
    %v96 = vld [vmem:[%s3] sm:$0xff]
    %v97 = vld [vmem:[%s3 + $0x8] sm:$0xff]
    %98 = vset.pattern.permute.xlu0 0
    %99 = vperm.xlu0 %98, %v96
    %v100 = vpop.permute.xlu0 %99
    %101 = vset.pattern.permute.xlu0 0
    %102 = vperm.xlu0 %101, %v97
    %v103 = vpop.permute.xlu0 %102
    %vm104 = vcmp.eq.s32.totalorder %v80, %v100
    %vm105 = vcmp.eq.s32.totalorder %v80, %v103
    %v106 = vsel %vm104, 1, 0
    %v107 = vsel %vm105, 1, 0
    %v108 = vcvt.s32.f32 %v106
    %v109 = vcvt.s32.f32 %v107
    %v110 = vpack.c.bf16 %v109, %v108
    %v111 = vsub.f32 1.0, %v108
    %v112 = vsub.f32 1.0, %v109
    %v113 = vmul.f32 %v111, 1e+30
    %v114 = vmul.f32 %v112, 1e+30
    %v115 = vld [vmem:[%s1] sm:$0xff]
    %v116 = vld [vmem:[%s1 + $0x8] sm:$0xff]
    %v117 = vld [vmem:[%s0] sm:$0xff]
    %v118 = vld [vmem:[%s4] sm:$0xff]
    %v119 = vld [vmem:[%s4 + $0x8] sm:$0xff]
    %v120 = vld [vmem:[%s5] sm:$0x1]
    %v122 = vperm.slane %v120, 0
    %vm124 = vcmask 130048
    %v126 = vsel %vm124, %v117, 0
    %128 = vmatpush.msra.mxu0 0.0
    %129 = vmatpush.msra.mxu0 0.0
    %130 = vmatpush.msra.mxu0 0.0
    %131 = vmatpush.msra.mxu0 0.0
    %132 = vmatpush.msra.mxu0 0.0
    %133 = vmatpush.msra.mxu0 0.0
    %134 = vmatpush.msra.mxu0 0.0
    %135 = vmatpush.msra.mxu0 0.0
    %136 = vmatpush.msra.mxu0 0.0
    %137 = vmatpush.msra.mxu0 0.0
    %138 = vmatpush.msra.mxu0 0.0
    %139 = vmatpush.msra.mxu0 0.0
    %140 = vmatpush.msra.mxu0 0.0
    %141 = vmatpush.msra.mxu0 0.0
    %142 = vmatpush.msra.mxu0 %v119
    %143 = vmatpush.msra.mxu0 %v118
    %144 = vmatmul.f32.gmra.mxu0 %v126
    %v145 = vpop.f32.mrf.mxu0
    %v146 = vadd.f32 %v122, %v145
    %147 = vdwg.mxu0
    %v148 = vmax.f32 %v146, 0.0
    %v149 = vld [vmem:[%s6] sm:$0xff]
    %v150 = vld [vmem:[%s6 + $0x8] sm:$0xff]
    %v151 = vld [vmem:[%s6 + $0x10] sm:$0xff]
    %v152 = vld [vmem:[%s6 + $0x18] sm:$0xff]
    %v153 = vld [vmem:[%s6 + $0x20] sm:$0xff]
    %v154 = vld [vmem:[%s6 + $0x28] sm:$0xff]
    %v155 = vld [vmem:[%s6 + $0x30] sm:$0xff]
    %v156 = vld [vmem:[%s6 + $0x38] sm:$0xff]
    %v157 = vld [vmem:[%s6 + $0x40] sm:$0xff]
    %v158 = vld [vmem:[%s6 + $0x48] sm:$0xff]
    %v159 = vld [vmem:[%s6 + $0x50] sm:$0xff]
    %v160 = vld [vmem:[%s6 + $0x58] sm:$0xff]
    %v161 = vld [vmem:[%s7] sm:$0x7]
    %v163 = vperm.slane %v161, 0
    %v164 = vperm.slane %v161, 1
    %v165 = vperm.slane %v161, 2
    %vm169 = vcmask 261120
    %v171 = vsel %vm169, %v148, 0
    %173 = vmatpush.msra.mxu0 0.0
    %174 = vmatpush.msra.mxu0 0.0
    %175 = vmatpush.msra.mxu0 0.0
    %176 = vmatpush.msra.mxu0 0.0
    %177 = vmatpush.msra.mxu0 0.0
    %178 = vmatpush.msra.mxu0 0.0
    %179 = vmatpush.msra.mxu0 0.0
    %180 = vmatpush.msra.mxu0 0.0
    %181 = vmatpush.msra.mxu0 0.0
    %182 = vmatpush.msra.mxu0 0.0
    %183 = vmatpush.msra.mxu0 0.0
    %184 = vmatpush.msra.mxu0 0.0
    %185 = vmatpush.msra.mxu0 %v158
    %186 = vmatpush.msra.mxu0 %v155
    %187 = vmatpush.msra.mxu0 %v152
    %188 = vmatpush.msra.mxu0 %v149
    %189 = vmatmul.f32.gmra.mxu0 %v171
    %v190 = vpop.f32.mrf.mxu0
    %v191 = vadd.f32 %v163, %v190
    %192 = vdwg.mxu0
    %193 = vmatpush.msra.mxu0 0.0
    %194 = vmatpush.msra.mxu0 0.0
    %195 = vmatpush.msra.mxu0 0.0
    %196 = vmatpush.msra.mxu0 0.0
    %197 = vmatpush.msra.mxu0 0.0
    %198 = vmatpush.msra.mxu0 0.0
    %199 = vmatpush.msra.mxu0 0.0
    %200 = vmatpush.msra.mxu0 0.0
    %201 = vmatpush.msra.mxu0 0.0
    %202 = vmatpush.msra.mxu0 0.0
    %203 = vmatpush.msra.mxu0 0.0
    %204 = vmatpush.msra.mxu0 0.0
    %205 = vmatpush.msra.mxu0 %v159
    %206 = vmatpush.msra.mxu0 %v156
    %207 = vmatpush.msra.mxu0 %v153
    %208 = vmatpush.msra.mxu0 %v150
    %209 = vmatmul.f32.gmra.mxu0 %v171
    %v210 = vpop.f32.mrf.mxu0
    %v211 = vadd.f32 %v164, %v210
    %212 = vdwg.mxu0
    %213 = vmatpush.msra.mxu0 0.0
    %214 = vmatpush.msra.mxu0 0.0
    %215 = vmatpush.msra.mxu0 0.0
    %216 = vmatpush.msra.mxu0 0.0
    %217 = vmatpush.msra.mxu0 0.0
    %218 = vmatpush.msra.mxu0 0.0
    %219 = vmatpush.msra.mxu0 0.0
    %220 = vmatpush.msra.mxu0 0.0
    %221 = vmatpush.msra.mxu0 0.0
    %222 = vmatpush.msra.mxu0 0.0
    %223 = vmatpush.msra.mxu0 0.0
    %224 = vmatpush.msra.mxu0 0.0
    %225 = vmatpush.msra.mxu0 %v160
    %226 = vmatpush.msra.mxu0 %v157
    %227 = vmatpush.msra.mxu0 %v154
    %228 = vmatpush.msra.mxu0 %v151
    %229 = vmatmul.f32.gmra.mxu0 %v171
    %v230 = vpop.f32.mrf.mxu0
    %v231 = vadd.f32 %v165, %v230
    %232 = vdwg.mxu0
    %v233 = vld [vmem:[%s8] sm:$0xff]
    %vm234 = vcmask 64512
    %v236 = vsel %vm234, %v115, 0
    %v239 = vsel %vm234, %v116, 0
    %241 = vmatpush.msra.mxu0 0.0
    %242 = vmatpush.msra.mxu0 0.0
    %243 = vmatpush.msra.mxu0 0.0
    %244 = vmatpush.msra.mxu0 0.0
    %245 = vmatpush.msra.mxu0 0.0
    %246 = vmatpush.msra.mxu0 0.0
    %247 = vmatpush.msra.mxu0 0.0
    %248 = vmatpush.msra.mxu0 0.0
    %249 = vmatpush.msra.mxu0 0.0
    %250 = vmatpush.msra.mxu0 0.0
    %251 = vmatpush.msra.mxu0 0.0
    %252 = vmatpush.msra.mxu0 0.0
    %253 = vmatpush.msra.mxu0 0.0
    %254 = vmatpush.msra.mxu0 0.0
    %255 = vmatpush.msra.mxu0 0.0
    %256 = vmatpush.msra.mxu0 %v233
    %257 = vmatmul.f32.gmra.mxu0 %v236
    %v258 = vpop.f32.mrf.mxu0
    %v259 = vadd.f32 0.0, %v258
    %260 = vmatmul.f32.gmra.mxu0 %v239
    %v261 = vpop.f32.mrf.mxu0
    %v262 = vadd.f32 0.0, %v261
    %263 = vdwg.mxu0
    %v264 = vld [vmem:[%s9] sm:$0xff]
    %v265 = vld [vmem:[%s9 + $0x8] sm:$0xff]
    %v266 = vld [vmem:[%s9 + $0x10] sm:$0xff]
    %v267 = vld [vmem:[%s9 + $0x18] sm:$0xff]
    %v268 = vld [vmem:[%s9 + $0x20] sm:$0xff]
    %v269 = vld [vmem:[%s9 + $0x28] sm:$0xff]
    %v270 = vld [vmem:[%s9 + $0x30] sm:$0xff]
    %v271 = vld [vmem:[%s9 + $0x38] sm:$0xff]
    %v272 = vld [vmem:[%s9 + $0x40] sm:$0xff]
    %v273 = vld [vmem:[%s9 + $0x48] sm:$0xff]
    %v274 = vld [vmem:[%s9 + $0x50] sm:$0xff]
    %v275 = vld [vmem:[%s9 + $0x58] sm:$0xff]
    %v276 = vld [vmem:[%s9 + $0x60] sm:$0xff]
    %v277 = vld [vmem:[%s9 + $0x68] sm:$0xff]
    %v278 = vld [vmem:[%s9 + $0x70] sm:$0xff]
    %v279 = vld [vmem:[%s9 + $0x78] sm:$0xff]
    %v280 = vpack.c.bf16 %v191, %v191
    %v282 = vsel %vm234, %v95, 0
    %vm284 = vcmask 1043456
    %v286 = vsel %vm284, %v280, 0
    %288 = vmatpush.bf16.msra.mxu0 0
    %289 = vmatpush.bf16.msra.mxu0 0
    %290 = vmatpush.bf16.msra.mxu0 0
    %291 = vmatpush.bf16.msra.mxu0 0
    %292 = vmatpush.bf16.msra.mxu0 0
    %293 = vmatpush.bf16.msra.mxu0 0
    %294 = vmatpush.bf16.msra.mxu0 0
    %295 = vmatpush.bf16.msra.mxu0 %v286
    %296 = vmatmul.bf16.gmra.mxu0 %v282
    %v297 = vpop.f32.mrf.mxu0
    %v298 = vadd.f32 0.0, %v297
    %v299 = vpop.f32.mrf.mxu0
    %v300 = vadd.f32 0.0, %v299
    %301 = vdwg.mxu0
    %v302 = vpack.c.bf16 %v211, %v211
    %v304 = vsel %vm234, %v110, 0
    %v307 = vsel %vm284, %v302, 0
    %309 = vmatpush.bf16.msra.mxu0 0
    %310 = vmatpush.bf16.msra.mxu0 0
    %311 = vmatpush.bf16.msra.mxu0 0
    %312 = vmatpush.bf16.msra.mxu0 0
    %313 = vmatpush.bf16.msra.mxu0 0
    %314 = vmatpush.bf16.msra.mxu0 0
    %315 = vmatpush.bf16.msra.mxu0 0
    %316 = vmatpush.bf16.msra.mxu0 %v307
    %317 = vmatmul.bf16.gmra.mxu0 %v304
    %v318 = vpop.f32.mrf.mxu0
    %v319 = vadd.f32 0.0, %v318
    %v320 = vpop.f32.mrf.mxu0
    %v321 = vadd.f32 0.0, %v320
    %322 = vdwg.mxu0
    %v323 = vadd.f32 %v298, %v319
    %v324 = vadd.f32 %v300, %v321
    %v325 = vadd.f32 %v323, %v259
    %v326 = vadd.f32 %v324, %v262
    %vm327 = vcmp.gt.f32.partialorder %v325, 0.0
    %vm328 = vcmp.gt.f32.partialorder %v326, 0.0
    %v329 = vmul.f32 %v325, 0.2
    %v330 = vmul.f32 %v326, 0.2
    %v331 = vsel %vm327, %v325, %v329
    %v332 = vsel %vm328, %v326, %v330
    %333 = vmatpush.msra.mxu0 %v279
    %334 = vmatpush.msra.mxu0 %v278
    %335 = vmatpush.msra.mxu0 %v277
    %336 = vmatpush.msra.mxu0 %v276
    %337 = vmatpush.msra.mxu0 %v275
    %338 = vmatpush.msra.mxu0 %v274
    %339 = vmatpush.msra.mxu0 %v273
    %340 = vmatpush.msra.mxu0 %v272
    %341 = vmatpush.msra.mxu0 %v271
    %342 = vmatpush.msra.mxu0 %v270
    %343 = vmatpush.msra.mxu0 %v269
    %344 = vmatpush.msra.mxu0 %v268
    %345 = vmatpush.msra.mxu0 %v267
    %346 = vmatpush.msra.mxu0 %v266
    %347 = vmatpush.msra.mxu0 %v265
    %348 = vmatpush.msra.mxu0 %v264
    %349 = vmatmul.f32.gmra.mxu0 %v331
    %v350 = vpop.f32.mrf.mxu0
    %v351 = vadd.f32 0.0, %v350
    %352 = vmatmul.f32.gmra.mxu0 %v332
    %v353 = vpop.f32.mrf.mxu0
    %v354 = vadd.f32 0.0, %v353
    %355 = vdwg.mxu0
    %357 = vset.pattern.permute.xlu0 0
    %358 = vperm.xlu0 %357, %v351
    %v359 = vpop.permute.xlu0 %358
    %362 = vset.pattern.permute.xlu0 0
    %363 = vperm.xlu0 %362, %v354
    %v364 = vpop.permute.xlu0 %363
    %v366 = vsub.f32 %v359, %v113
    %v367 = vsub.f32 %v364, %v114
    %v368 = vsel %vm234, %v366, -inf
    %v369 = vsel %vm234, %v367, -inf
    %v370 = vmax.f32 %v368, %v369
    %v371 = vrot.slane %v370, 4
    %v372 = vmax.f32 %v370, %v371
    %v373 = vrot.slane %v372, 2
    %v374 = vmax.f32 %v372, %v373
    %v375 = vrot.slane %v374, 1
    %v376 = vmax.f32 %v374, %v375
    %377 = vset.pattern.permute.xlu0 1
    %378 = vperm.xlu0 %377, %v351
    %v379 = vpop.permute.xlu0 %378
    %381 = vset.pattern.permute.xlu0 1
    %382 = vperm.xlu0 %381, %v354
    %v383 = vpop.permute.xlu0 %382
    %v385 = vsub.f32 %v379, %v113
    %v386 = vsub.f32 %v383, %v114
    %v387 = vsel %vm234, %v385, -inf
    %v388 = vsel %vm234, %v386, -inf
    %v389 = vmax.f32 %v387, %v388
    %v390 = vrot.slane %v389, 4
    %v391 = vmax.f32 %v389, %v390
    %v392 = vrot.slane %v391, 2
    %v393 = vmax.f32 %v391, %v392
    %v394 = vrot.slane %v393, 1
    %v395 = vmax.f32 %v393, %v394
    %396 = vset.pattern.permute.xlu0 2
    %397 = vperm.xlu0 %396, %v351
    %v398 = vpop.permute.xlu0 %397
    %400 = vset.pattern.permute.xlu0 2
    %401 = vperm.xlu0 %400, %v354
    %v402 = vpop.permute.xlu0 %401
    %v404 = vsub.f32 %v398, %v113
    %v405 = vsub.f32 %v402, %v114
    %v406 = vsel %vm234, %v404, -inf
    %v407 = vsel %vm234, %v405, -inf
    %v408 = vmax.f32 %v406, %v407
    %v409 = vrot.slane %v408, 4
    %v410 = vmax.f32 %v408, %v409
    %v411 = vrot.slane %v410, 2
    %v412 = vmax.f32 %v410, %v411
    %v413 = vrot.slane %v412, 1
    %v414 = vmax.f32 %v412, %v413
    %415 = vset.pattern.permute.xlu0 3
    %416 = vperm.xlu0 %415, %v351
    %v417 = vpop.permute.xlu0 %416
    %419 = vset.pattern.permute.xlu0 3
    %420 = vperm.xlu0 %419, %v354
    %v421 = vpop.permute.xlu0 %420
    %v423 = vsub.f32 %v417, %v113
    %v424 = vsub.f32 %v421, %v114
    %v425 = vsel %vm234, %v423, -inf
    %v426 = vsel %vm234, %v424, -inf
    %v427 = vmax.f32 %v425, %v426
    %v428 = vrot.slane %v427, 4
    %v429 = vmax.f32 %v427, %v428
    %v430 = vrot.slane %v429, 2
    %v431 = vmax.f32 %v429, %v430
    %v432 = vrot.slane %v431, 1
    %v433 = vmax.f32 %v431, %v432
    %vm434 = vcmask 1040384
    %v435 = vsel %vm434, %v376, %v395
    %vm436 = vcmask 1041408
    %v437 = vsel %vm436, %v435, %v414
    %vm438 = vcmask 1042432
    %v439 = vsel %vm438, %v437, %v433
    %v441 = vsel %vm234, %v108, 0
    %v444 = vsel %vm234, %v109, 0
    %v447 = vsel %vm234, %v439, 0
    %449 = vmatpush.xpose.msra.mxu0 0.0
    %450 = vmatpush.xpose.msra.mxu0 0.0
    %451 = vmatpush.xpose.msra.mxu0 0.0
    %452 = vmatpush.xpose.msra.mxu0 0.0
    %453 = vmatpush.xpose.msra.mxu0 0.0
    %454 = vmatpush.xpose.msra.mxu0 0.0
    %455 = vmatpush.xpose.msra.mxu0 0.0
    %456 = vmatpush.xpose.msra.mxu0 0.0
    %457 = vmatpush.xpose.msra.mxu0 0.0
    %458 = vmatpush.xpose.msra.mxu0 0.0
    %459 = vmatpush.xpose.msra.mxu0 0.0
    %460 = vmatpush.xpose.msra.mxu0 0.0
    %461 = vmatpush.xpose.msra.mxu0 0.0
    %462 = vmatpush.xpose.msra.mxu0 0.0
    %463 = vmatpush.xpose.msra.mxu0 0.0
    %464 = vmatpush.xpose.msra.mxu0 %v447
    %465 = vmatmul.f32.gmra.mxu0 %v441
    %v466 = vpop.f32.mrf.mxu0
    %v467 = vadd.f32 0.0, %v466
    %468 = vmatmul.f32.gmra.mxu0 %v444
    %v469 = vpop.f32.mrf.mxu0
    %v470 = vadd.f32 0.0, %v469
    %471 = vdwg.mxu0
    %v472 = vsub.f32 %v351, %v467
    %v473 = vsub.f32 %v354, %v470
    %v474 = vmul.f32 %v472, 1.442695
    %v475 = vpow.pop %v474
    %v476 = vmul.f32 %v473, 1.442695
    %v477 = vpow.pop %v476
    %478 = vxpose.xlu0.b32.start [1/16] %v108, 128
    %479 = vxpose.xlu0.b32.cont [2/16] %v109, 128
    %480 = vxpose.xlu0.b32.cont [3/16] 0.0, 128
    %481 = vxpose.xlu0.b32.cont [4/16] 0.0, 128
    %482 = vxpose.xlu0.b32.cont [5/16] 0.0, 128
    %483 = vxpose.xlu0.b32.cont [6/16] 0.0, 128
    %484 = vxpose.xlu0.b32.cont [7/16] 0.0, 128
    %485 = vxpose.xlu0.b32.cont [8/16] 0.0, 128
    %486 = vxpose.xlu0.b32.cont [9/16] 0.0, 128
    %487 = vxpose.xlu0.b32.cont [10/16] 0.0, 128
    %488 = vxpose.xlu0.b32.cont [11/16] 0.0, 128
    %489 = vxpose.xlu0.b32.cont [12/16] 0.0, 128
    %490 = vxpose.xlu0.b32.cont [13/16] 0.0, 128
    %491 = vxpose.xlu0.b32.cont [14/16] 0.0, 128
    %492 = vxpose.xlu0.b32.cont [15/16] 0.0, 128
    %493 = vxpose.xlu0.b32.end [16/16] 0.0, 128
    %v494 = vpop.trf.xlu0
    %v495 = vpop.trf.xlu0
    %v496 = vpop.trf.xlu0
    %v497 = vpop.trf.xlu0
    %v498 = vpop.trf.xlu0
    %v499 = vpop.trf.xlu0
    %v500 = vpop.trf.xlu0
    %v501 = vpop.trf.xlu0
    %v502 = vpop.trf.xlu0
    %v503 = vpop.trf.xlu0
    %v504 = vpop.trf.xlu0
    %v505 = vpop.trf.xlu0
    %v506 = vpop.trf.xlu0
    %v507 = vpop.trf.xlu0
    %v508 = vpop.trf.xlu0
    %v509 = vpop.trf.xlu0
    %v511 = vsel %vm124, %v494, 0
    %513 = vmatpush.msra.mxu0 0.0
    %514 = vmatpush.msra.mxu0 0.0
    %515 = vmatpush.msra.mxu0 0.0
    %516 = vmatpush.msra.mxu0 0.0
    %517 = vmatpush.msra.mxu0 0.0
    %518 = vmatpush.msra.mxu0 0.0
    %519 = vmatpush.msra.mxu0 0.0
    %520 = vmatpush.msra.mxu0 0.0
    %521 = vmatpush.msra.mxu0 0.0
    %522 = vmatpush.msra.mxu0 0.0
    %523 = vmatpush.msra.mxu0 0.0
    %524 = vmatpush.msra.mxu0 0.0
    %525 = vmatpush.msra.mxu0 0.0
    %526 = vmatpush.msra.mxu0 0.0
    %527 = vmatpush.msra.mxu0 %v477
    %528 = vmatpush.msra.mxu0 %v475
    %529 = vmatmul.f32.gmra.mxu0 %v511
    %v530 = vpop.f32.mrf.mxu0
    %v531 = vadd.f32 0.0, %v530
    %532 = vdwg.mxu0
    %533 = vmatpush.msra.mxu0 0.0
    %534 = vmatpush.msra.mxu0 0.0
    %535 = vmatpush.msra.mxu0 0.0
    %536 = vmatpush.msra.mxu0 0.0
    %537 = vmatpush.msra.mxu0 0.0
    %538 = vmatpush.msra.mxu0 0.0
    %539 = vmatpush.msra.mxu0 0.0
    %540 = vmatpush.msra.mxu0 0.0
    %541 = vmatpush.msra.mxu0 0.0
    %542 = vmatpush.msra.mxu0 0.0
    %543 = vmatpush.msra.mxu0 0.0
    %544 = vmatpush.msra.mxu0 0.0
    %545 = vmatpush.msra.mxu0 0.0
    %546 = vmatpush.msra.mxu0 0.0
    %547 = vmatpush.msra.mxu0 0.0
    %548 = vmatpush.msra.mxu0 %v531
    %549 = vmatmul.f32.gmra.mxu0 %v441
    %v550 = vpop.f32.mrf.mxu0
    %v551 = vadd.f32 1e-09, %v550
    %552 = vmatmul.f32.gmra.mxu0 %v444
    %v553 = vpop.f32.mrf.mxu0
    %v554 = vadd.f32 1e-09, %v553
    %555 = vdwg.mxu0
    %v556 = vrcp.pop %v551
    %v557 = vrcp.pop %v554
    %v558 = vmul.f32 %v475, %v556
    %v559 = vmul.f32 %v477, %v557
    %v560 = vperm.slane %v558, 0
    %v561 = vlaneseq
    %v562 = vshrl.u32 %v561, 7
    %564 = vset.pattern.permute.xlu0 %v562
    %565 = vperm.xlu0 %564, %v560
    %v566 = vpop.permute.xlu0 %565
    %v567 = vperm.slane %v558, 1
    %v568 = vlaneseq
    %v569 = vshrl.u32 %v568, 7
    %571 = vset.pattern.permute.xlu0 %v569
    %572 = vperm.xlu0 %571, %v567
    %v573 = vpop.permute.xlu0 %572
    %v574 = vperm.slane %v558, 2
    %v575 = vlaneseq
    %v576 = vshrl.u32 %v575, 7
    %578 = vset.pattern.permute.xlu0 %v576
    %579 = vperm.xlu0 %578, %v574
    %v580 = vpop.permute.xlu0 %579
    %v581 = vperm.slane %v558, 3
    %v582 = vlaneseq
    %v583 = vshrl.u32 %v582, 7
    %585 = vset.pattern.permute.xlu0 %v583
    %586 = vperm.xlu0 %585, %v581
    %v587 = vpop.permute.xlu0 %586
    %v588 = vperm.slane %v558, 4
    %v589 = vlaneseq
    %v590 = vshrl.u32 %v589, 7
    %592 = vset.pattern.permute.xlu0 %v590
    %593 = vperm.xlu0 %592, %v588
    %v594 = vpop.permute.xlu0 %593
    %v595 = vperm.slane %v558, 5
    %v596 = vlaneseq
    %v597 = vshrl.u32 %v596, 7
    %599 = vset.pattern.permute.xlu0 %v597
    %600 = vperm.xlu0 %599, %v595
    %v601 = vpop.permute.xlu0 %600
    %v602 = vperm.slane %v558, 6
    %v603 = vlaneseq
    %v604 = vshrl.u32 %v603, 7
    %606 = vset.pattern.permute.xlu0 %v604
    %607 = vperm.xlu0 %606, %v602
    %v608 = vpop.permute.xlu0 %607
    %v609 = vperm.slane %v558, 7
    %v610 = vlaneseq
    %v611 = vshrl.u32 %v610, 7
    %613 = vset.pattern.permute.xlu0 %v611
    %614 = vperm.xlu0 %613, %v609
    %v615 = vpop.permute.xlu0 %614
    %v616 = vperm.slane %v559, 0
    %v617 = vlaneseq
    %v618 = vshrl.u32 %v617, 7
    %620 = vset.pattern.permute.xlu0 %v618
    %621 = vperm.xlu0 %620, %v616
    %v622 = vpop.permute.xlu0 %621
    %v623 = vperm.slane %v559, 1
    %v624 = vlaneseq
    %v625 = vshrl.u32 %v624, 7
    %627 = vset.pattern.permute.xlu0 %v625
    %628 = vperm.xlu0 %627, %v623
    %v629 = vpop.permute.xlu0 %628
    %v630 = vperm.slane %v559, 2
    %v631 = vlaneseq
    %v632 = vshrl.u32 %v631, 7
    %634 = vset.pattern.permute.xlu0 %v632
    %635 = vperm.xlu0 %634, %v630
    %v636 = vpop.permute.xlu0 %635
    %v637 = vperm.slane %v559, 3
    %v638 = vlaneseq
    %v639 = vshrl.u32 %v638, 7
    %641 = vset.pattern.permute.xlu0 %v639
    %642 = vperm.xlu0 %641, %v637
    %v643 = vpop.permute.xlu0 %642
    %v644 = vperm.slane %v559, 4
    %v645 = vlaneseq
    %v646 = vshrl.u32 %v645, 7
    %648 = vset.pattern.permute.xlu0 %v646
    %649 = vperm.xlu0 %648, %v644
    %v650 = vpop.permute.xlu0 %649
    %v651 = vperm.slane %v559, 5
    %v652 = vlaneseq
    %v653 = vshrl.u32 %v652, 7
    %655 = vset.pattern.permute.xlu0 %v653
    %656 = vperm.xlu0 %655, %v651
    %v657 = vpop.permute.xlu0 %656
    %v658 = vperm.slane %v559, 6
    %v659 = vlaneseq
    %v660 = vshrl.u32 %v659, 7
    %662 = vset.pattern.permute.xlu0 %v660
    %663 = vperm.xlu0 %662, %v658
    %v664 = vpop.permute.xlu0 %663
    %v665 = vperm.slane %v559, 7
    %v666 = vlaneseq
    %v667 = vshrl.u32 %v666, 7
    %669 = vset.pattern.permute.xlu0 %v667
    %670 = vperm.xlu0 %669, %v665
    %v671 = vpop.permute.xlu0 %670
    %v672 = vrot.slane %v580, 4
    %vm673 = vcmask 1047556
    %v674 = vsel %vm673, %v672, %v566
    %v676 = vunpack.c.l.s4 1983009808
    %v677 = vunpack.c.0.s8 %v676
    %v678 = vperm.slane %v674, %v677
    %v679 = vrot.slane %v587, 4
    %v680 = vsel %vm673, %v679, %v573
    %v682 = vunpack.c.l.s4 1983009808
    %v683 = vunpack.c.0.s8 %v682
    %v684 = vperm.slane %v680, %v683
    %v685 = vrot.slane %v608, 4
    %v686 = vsel %vm673, %v685, %v594
    %v688 = vunpack.c.l.s4 1983009808
    %v689 = vunpack.c.0.s8 %v688
    %v690 = vperm.slane %v686, %v689
    %v691 = vrot.slane %v615, 4
    %v692 = vsel %vm673, %v691, %v601
    %v694 = vunpack.c.l.s4 1983009808
    %v695 = vunpack.c.0.s8 %v694
    %v696 = vperm.slane %v692, %v695
    %v697 = vrot.slane %v684, 4
    %v698 = vsel %vm673, %v697, %v678
    %v699 = vrot.slane %v678, 4
    %v700 = vsel %vm673, %v684, %v699
    %v702 = vunpack.c.l.s4 1934713408
    %v703 = vunpack.c.0.s8 %v702
    %v704 = vperm.slane %v698, %v703
    %v706 = vunpack.c.l.s4 1934713408
    %v707 = vunpack.c.0.s8 %v706
    %v708 = vperm.slane %v700, %v707
    %v709 = vrot.slane %v696, 4
    %v710 = vsel %vm673, %v709, %v690
    %v711 = vrot.slane %v690, 4
    %v712 = vsel %vm673, %v696, %v711
    %v714 = vunpack.c.l.s4 1934713408
    %v715 = vunpack.c.0.s8 %v714
    %v716 = vperm.slane %v710, %v715
    %v718 = vunpack.c.l.s4 1934713408
    %v719 = vunpack.c.0.s8 %v718
    %v720 = vperm.slane %v712, %v719
    %v721 = vrot.slane %v716, 4
    %v722 = vsel %vm673, %v721, %v704
    %v723 = vrot.slane %v704, 4
    %v724 = vsel %vm673, %v716, %v723
    %v725 = vrot.slane %v720, 4
    %v726 = vsel %vm673, %v725, %v708
    %v727 = vrot.slane %v708, 4
    %v728 = vsel %vm673, %v720, %v727
    %v729 = vrot.slane %v636, 4
    %v730 = vsel %vm673, %v729, %v622
    %v732 = vunpack.c.l.s4 1983009808
    %v733 = vunpack.c.0.s8 %v732
    %v734 = vperm.slane %v730, %v733
    %v735 = vrot.slane %v643, 4
    %v736 = vsel %vm673, %v735, %v629
    %v738 = vunpack.c.l.s4 1983009808
    %v739 = vunpack.c.0.s8 %v738
    %v740 = vperm.slane %v736, %v739
    %v741 = vrot.slane %v664, 4
    %v742 = vsel %vm673, %v741, %v650
    %v744 = vunpack.c.l.s4 1983009808
    %v745 = vunpack.c.0.s8 %v744
    %v746 = vperm.slane %v742, %v745
    %v747 = vrot.slane %v671, 4
    %v748 = vsel %vm673, %v747, %v657
    %v750 = vunpack.c.l.s4 1983009808
    %v751 = vunpack.c.0.s8 %v750
    %v752 = vperm.slane %v748, %v751
    %v753 = vrot.slane %v740, 4
    %v754 = vsel %vm673, %v753, %v734
    %v755 = vrot.slane %v734, 4
    %v756 = vsel %vm673, %v740, %v755
    %v758 = vunpack.c.l.s4 1934713408
    %v759 = vunpack.c.0.s8 %v758
    %v760 = vperm.slane %v754, %v759
    %v762 = vunpack.c.l.s4 1934713408
    %v763 = vunpack.c.0.s8 %v762
    %v764 = vperm.slane %v756, %v763
    %v765 = vrot.slane %v752, 4
    %v766 = vsel %vm673, %v765, %v746
    %v767 = vrot.slane %v746, 4
    %v768 = vsel %vm673, %v752, %v767
    %v770 = vunpack.c.l.s4 1934713408
    %v771 = vunpack.c.0.s8 %v770
    %v772 = vperm.slane %v766, %v771
    %v774 = vunpack.c.l.s4 1934713408
    %v775 = vunpack.c.0.s8 %v774
    %v776 = vperm.slane %v768, %v775
    %v777 = vrot.slane %v772, 4
    %v778 = vsel %vm673, %v777, %v760
    %v779 = vrot.slane %v760, 4
    %v780 = vsel %vm673, %v772, %v779
    %v781 = vrot.slane %v776, 4
    %v782 = vsel %vm673, %v781, %v764
    %v783 = vrot.slane %v764, 4
    %v784 = vsel %vm673, %v776, %v783
    %787 = vrot.lane.b32.xlu0 %v724, 32
    %v788 = vpop.permute.xlu0 %787
    %789 = vrot.lane.b32.xlu0 %v780, 32
    %v790 = vpop.permute.xlu0 %789
    %795 = vrot.lane.b32.xlu0 %v726, 64
    %v796 = vpop.permute.xlu0 %795
    %797 = vrot.lane.b32.xlu0 %v782, 64
    %v798 = vpop.permute.xlu0 %797
    %803 = vrot.lane.b32.xlu0 %v728, 96
    %v804 = vpop.permute.xlu0 %803
    %805 = vrot.lane.b32.xlu0 %v784, 96
    %v806 = vpop.permute.xlu0 %805
    %v809 = vsel %vm169, %v722, %v788
    %v810 = vsel %vm169, %v778, %v790
    %vm811 = vcmask 523264
    %v812 = vsel %vm811, %v809, %v796
    %v813 = vsel %vm811, %v810, %v798
    %vm814 = vcmask 785408
    %v815 = vsel %vm814, %v812, %v804
    %v816 = vsel %vm814, %v813, %v806
    %v817 = vmul.f32 %v298, %v815
    %v818 = vmul.f32 %v300, %v816
    %v819 = vpack.c.bf16 %v818, %v817
    %v820 = vld [vmem:[%s10] sm:$0x1]
    %v822 = vperm.slane %v820, 0
    %824 = vxpose.xlu0.c.b16.start [1/8] %v110, 128
    %825 = vxpose.xlu0.c.b16.cont [2/8] 0, 128
    %826 = vxpose.xlu0.c.b16.cont [3/8] 0, 128
    %827 = vxpose.xlu0.c.b16.cont [4/8] 0, 128
    %828 = vxpose.xlu0.c.b16.cont [5/8] 0, 128
    %829 = vxpose.xlu0.c.b16.cont [6/8] 0, 128
    %830 = vxpose.xlu0.c.b16.cont [7/8] 0, 128
    %831 = vxpose.xlu0.c.b16.end [8/8] 0, 128
    %v832 = vpop.trf.xlu0
    %v833 = vpop.trf.xlu0
    %v834 = vpop.trf.xlu0
    %v835 = vpop.trf.xlu0
    %v836 = vpop.trf.xlu0
    %v837 = vpop.trf.xlu0
    %v838 = vpop.trf.xlu0
    %v839 = vpop.trf.xlu0
    %v841 = vsel %vm124, %v832, 0
    %843 = vmatpush.bf16.msra.mxu0 0
    %844 = vmatpush.bf16.msra.mxu0 0
    %845 = vmatpush.bf16.msra.mxu0 0
    %846 = vmatpush.bf16.msra.mxu0 0
    %847 = vmatpush.bf16.msra.mxu0 0
    %848 = vmatpush.bf16.msra.mxu0 0
    %849 = vmatpush.bf16.msra.mxu0 0
    %850 = vmatpush.bf16.msra.mxu0 %v819
    %851 = vmatmul.bf16.gmra.mxu0 %v841
    %v852 = vpop.f32.mrf.mxu0
    %v853 = vadd.f32 %v822, %v852
    %v854 = vpop.f32.mrf.mxu0
    %855 = vdwg.mxu0
    %v856 = vadd.f32 %v853, %v231
    %v857 = vld [vmem:[%s11] sm:$0x1]
    %v859 = vperm.slane %v857, 0
    %v861 = vmul.f32 %v856, %v859
    %v862 = vld [vmem:[%s12] sm:$0x1]
    %v864 = vperm.slane %v862, 0
    %v866 = vadd.f32 %v861, %v864
    %v867 = vmax.f32 %v866, 0.0
    %v868 = vld [vmem:[%s13] sm:$0xff]
    %v869 = vld [vmem:[%s13 + $0x8] sm:$0xff]
    %v870 = vld [vmem:[%s13 + $0x10] sm:$0xff]
    %v871 = vld [vmem:[%s13 + $0x18] sm:$0xff]
    %v872 = vld [vmem:[%s13 + $0x20] sm:$0xff]
    %v873 = vld [vmem:[%s13 + $0x28] sm:$0xff]
    %v874 = vld [vmem:[%s13 + $0x30] sm:$0xff]
    %v875 = vld [vmem:[%s13 + $0x38] sm:$0xff]
    %v876 = vld [vmem:[%s13 + $0x40] sm:$0xff]
    %v877 = vld [vmem:[%s13 + $0x48] sm:$0xff]
    %v878 = vld [vmem:[%s13 + $0x50] sm:$0xff]
    %v879 = vld [vmem:[%s13 + $0x58] sm:$0xff]
    %v880 = vld [vmem:[%s13 + $0x60] sm:$0xff]
    %v881 = vld [vmem:[%s13 + $0x68] sm:$0xff]
    %v882 = vld [vmem:[%s13 + $0x70] sm:$0xff]
    %v883 = vld [vmem:[%s13 + $0x78] sm:$0xff]
    %v884 = vld [vmem:[%s14] sm:$0x1]
    %v886 = vperm.slane %v884, 0
    %888 = vmatpush.msra.mxu0 %v883
    %889 = vmatpush.msra.mxu0 %v882
    %890 = vmatpush.msra.mxu0 %v881
    %891 = vmatpush.msra.mxu0 %v880
    %892 = vmatpush.msra.mxu0 %v879
    %893 = vmatpush.msra.mxu0 %v878
    %894 = vmatpush.msra.mxu0 %v877
    %895 = vmatpush.msra.mxu0 %v876
    %896 = vmatpush.msra.mxu0 %v875
    %897 = vmatpush.msra.mxu0 %v874
    %898 = vmatpush.msra.mxu0 %v873
    %899 = vmatpush.msra.mxu0 %v872
    %900 = vmatpush.msra.mxu0 %v871
    %901 = vmatpush.msra.mxu0 %v870
    %902 = vmatpush.msra.mxu0 %v869
    %903 = vmatpush.msra.mxu0 %v868
    %904 = vmatmul.f32.gmra.mxu0 %v867
    %v905 = vpop.f32.mrf.mxu0
    %v906 = vadd.f32 %v886, %v905
    %907 = vdwg.mxu0
    %v908 = vld [vmem:[%s15] sm:$0xff]
    %v909 = vld [vmem:[%s15 + $0x8] sm:$0xff]
    %v910 = vld [vmem:[%s15 + $0x10] sm:$0xff]
    %v911 = vld [vmem:[%s15 + $0x18] sm:$0xff]
    %v912 = vld [vmem:[%s15 + $0x20] sm:$0xff]
    %v913 = vld [vmem:[%s15 + $0x28] sm:$0xff]
    %v914 = vld [vmem:[%s15 + $0x30] sm:$0xff]
    %v915 = vld [vmem:[%s15 + $0x38] sm:$0xff]
    %v916 = vld [vmem:[%s15 + $0x40] sm:$0xff]
    %v917 = vld [vmem:[%s15 + $0x48] sm:$0xff]
    %v918 = vld [vmem:[%s15 + $0x50] sm:$0xff]
    %v919 = vld [vmem:[%s15 + $0x58] sm:$0xff]
    %v920 = vld [vmem:[%s15 + $0x60] sm:$0xff]
    %v921 = vld [vmem:[%s15 + $0x68] sm:$0xff]
    %v922 = vld [vmem:[%s15 + $0x70] sm:$0xff]
    %v923 = vld [vmem:[%s15 + $0x78] sm:$0xff]
    %v924 = vld [vmem:[%s16] sm:$0x1]
    %v926 = vperm.slane %v924, 0
    %928 = vmatpush.msra.mxu0 %v923
    %929 = vmatpush.msra.mxu0 %v922
    %930 = vmatpush.msra.mxu0 %v921
    %931 = vmatpush.msra.mxu0 %v920
    %932 = vmatpush.msra.mxu0 %v919
    %933 = vmatpush.msra.mxu0 %v918
    %934 = vmatpush.msra.mxu0 %v917
    %935 = vmatpush.msra.mxu0 %v916
    %936 = vmatpush.msra.mxu0 %v915
    %937 = vmatpush.msra.mxu0 %v914
    %938 = vmatpush.msra.mxu0 %v913
    %939 = vmatpush.msra.mxu0 %v912
    %940 = vmatpush.msra.mxu0 %v911
    %941 = vmatpush.msra.mxu0 %v910
    %942 = vmatpush.msra.mxu0 %v909
    %943 = vmatpush.msra.mxu0 %v908
    %944 = vmatmul.f32.gmra.mxu0 %v867
    %v945 = vpop.f32.mrf.mxu0
    %v946 = vadd.f32 %v926, %v945
    %947 = vdwg.mxu0
    %v948 = vld [vmem:[%s17] sm:$0xff]
    %949 = vmatpush.msra.mxu0 0.0
    %950 = vmatpush.msra.mxu0 0.0
    %951 = vmatpush.msra.mxu0 0.0
    %952 = vmatpush.msra.mxu0 0.0
    %953 = vmatpush.msra.mxu0 0.0
    %954 = vmatpush.msra.mxu0 0.0
    %955 = vmatpush.msra.mxu0 0.0
    %956 = vmatpush.msra.mxu0 0.0
    %957 = vmatpush.msra.mxu0 0.0
    %958 = vmatpush.msra.mxu0 0.0
    %959 = vmatpush.msra.mxu0 0.0
    %960 = vmatpush.msra.mxu0 0.0
    %961 = vmatpush.msra.mxu0 0.0
    %962 = vmatpush.msra.mxu0 0.0
    %963 = vmatpush.msra.mxu0 0.0
    %964 = vmatpush.msra.mxu0 %v948
    %965 = vmatmul.f32.gmra.mxu0 %v236
    %v966 = vpop.f32.mrf.mxu0
    %v967 = vadd.f32 0.0, %v966
    %968 = vmatmul.f32.gmra.mxu0 %v239
    %v969 = vpop.f32.mrf.mxu0
    %v970 = vadd.f32 0.0, %v969
    %971 = vdwg.mxu0
    %v972 = vld [vmem:[%s18] sm:$0xff]
    %v973 = vld [vmem:[%s18 + $0x8] sm:$0xff]
    %v974 = vld [vmem:[%s18 + $0x10] sm:$0xff]
    %v975 = vld [vmem:[%s18 + $0x18] sm:$0xff]
    %v976 = vpack.c.bf16 %v906, %v906
    %v978 = vsel %vm284, %v976, 0
    %980 = vmatpush.bf16.msra.mxu0 0
    %981 = vmatpush.bf16.msra.mxu0 0
    %982 = vmatpush.bf16.msra.mxu0 0
    %983 = vmatpush.bf16.msra.mxu0 0
    %984 = vmatpush.bf16.msra.mxu0 0
    %985 = vmatpush.bf16.msra.mxu0 0
    %986 = vmatpush.bf16.msra.mxu0 0
    %987 = vmatpush.bf16.msra.mxu0 %v978
    %988 = vmatmul.bf16.gmra.mxu0 %v282
    %v989 = vpop.f32.mrf.mxu0
    %v990 = vadd.f32 0.0, %v989
    %v991 = vpop.f32.mrf.mxu0
    %v992 = vadd.f32 0.0, %v991
    %993 = vdwg.mxu0
    %v994 = vpack.c.bf16 %v946, %v946
    %v996 = vsel %vm284, %v994, 0
    %998 = vmatpush.bf16.msra.mxu0 0
    %999 = vmatpush.bf16.msra.mxu0 0
    %1000 = vmatpush.bf16.msra.mxu0 0
    %1001 = vmatpush.bf16.msra.mxu0 0
    %1002 = vmatpush.bf16.msra.mxu0 0
    %1003 = vmatpush.bf16.msra.mxu0 0
    %1004 = vmatpush.bf16.msra.mxu0 0
    %1005 = vmatpush.bf16.msra.mxu0 %v996
    %1006 = vmatmul.bf16.gmra.mxu0 %v304
    %v1007 = vpop.f32.mrf.mxu0
    %v1008 = vadd.f32 0.0, %v1007
    %v1009 = vpop.f32.mrf.mxu0
    %v1010 = vadd.f32 0.0, %v1009
    %1011 = vdwg.mxu0
    %v1012 = vadd.f32 %v990, %v1008
    %v1013 = vadd.f32 %v992, %v1010
    %v1014 = vadd.f32 %v1012, %v967
    %v1015 = vadd.f32 %v1013, %v970
    %vm1016 = vcmp.gt.f32.partialorder %v1014, 0.0
    %vm1017 = vcmp.gt.f32.partialorder %v1015, 0.0
    %v1018 = vmul.f32 %v1014, 0.2
    %v1019 = vmul.f32 %v1015, 0.2
    %v1020 = vsel %vm1016, %v1014, %v1018
    %v1021 = vsel %vm1017, %v1015, %v1019
    %v1023 = vsel %vm169, %v1020, 0
    %v1026 = vsel %vm169, %v1021, 0
    %1028 = vmatpush.msra.mxu0 0.0
    %1029 = vmatpush.msra.mxu0 0.0
    %1030 = vmatpush.msra.mxu0 0.0
    %1031 = vmatpush.msra.mxu0 0.0
    %1032 = vmatpush.msra.mxu0 0.0
    %1033 = vmatpush.msra.mxu0 0.0
    %1034 = vmatpush.msra.mxu0 0.0
    %1035 = vmatpush.msra.mxu0 0.0
    %1036 = vmatpush.msra.mxu0 0.0
    %1037 = vmatpush.msra.mxu0 0.0
    %1038 = vmatpush.msra.mxu0 0.0
    %1039 = vmatpush.msra.mxu0 0.0
    %1040 = vmatpush.msra.mxu0 %v975
    %1041 = vmatpush.msra.mxu0 %v974
    %1042 = vmatpush.msra.mxu0 %v973
    %1043 = vmatpush.msra.mxu0 %v972
    %1044 = vmatmul.f32.gmra.mxu0 %v1023
    %v1045 = vpop.f32.mrf.mxu0
    %v1046 = vadd.f32 0.0, %v1045
    %1047 = vmatmul.f32.gmra.mxu0 %v1026
    %v1048 = vpop.f32.mrf.mxu0
    %v1049 = vadd.f32 0.0, %v1048
    %1050 = vdwg.mxu0
    %1052 = vset.pattern.permute.xlu0 0
    %1053 = vperm.xlu0 %1052, %v1046
    %v1054 = vpop.permute.xlu0 %1053
    %1057 = vset.pattern.permute.xlu0 0
    %1058 = vperm.xlu0 %1057, %v1049
    %v1059 = vpop.permute.xlu0 %1058
    %v1061 = vsub.f32 %v1054, %v113
    %v1062 = vsub.f32 %v1059, %v114
    %v1063 = vsel %vm234, %v1061, -inf
    %v1064 = vsel %vm234, %v1062, -inf
    %v1065 = vmax.f32 %v1063, %v1064
    %v1066 = vrot.slane %v1065, 4
    %v1067 = vmax.f32 %v1065, %v1066
    %v1068 = vrot.slane %v1067, 2
    %v1069 = vmax.f32 %v1067, %v1068
    %v1070 = vrot.slane %v1069, 1
    %v1071 = vmax.f32 %v1069, %v1070
    %v1072 = vmul.f32 %v108, %v1071
    %v1073 = vmul.f32 %v109, %v1071
    %v1074 = vsel %vm234, %v1072, 0.0
    %1075 = vadd.xlane.f32.xlu0 %v1074
    %v1076 = vpop.xlane.xlu0 %1075
    %v1077 = vsel %vm234, %v1073, 0.0
    %1078 = vadd.xlane.f32.xlu0 %v1077
    %v1079 = vpop.xlane.xlu0 %1078
    %v1080 = vsub.f32 %v1046, %v1076
    %v1081 = vsub.f32 %v1049, %v1079
    %v1082 = vmul.f32 %v1080, 1.442695
    %v1083 = vpow.pop %v1082
    %v1084 = vmul.f32 %v1081, 1.442695
    %v1085 = vpow.pop %v1084
    %1086 = vmatpush.msra.mxu0 0.0
    %1087 = vmatpush.msra.mxu0 0.0
    %1088 = vmatpush.msra.mxu0 0.0
    %1089 = vmatpush.msra.mxu0 0.0
    %1090 = vmatpush.msra.mxu0 0.0
    %1091 = vmatpush.msra.mxu0 0.0
    %1092 = vmatpush.msra.mxu0 0.0
    %1093 = vmatpush.msra.mxu0 0.0
    %1094 = vmatpush.msra.mxu0 0.0
    %1095 = vmatpush.msra.mxu0 0.0
    %1096 = vmatpush.msra.mxu0 0.0
    %1097 = vmatpush.msra.mxu0 0.0
    %1098 = vmatpush.msra.mxu0 0.0
    %1099 = vmatpush.msra.mxu0 0.0
    %1100 = vmatpush.msra.mxu0 %v1085
    %1101 = vmatpush.msra.mxu0 %v1083
    %1102 = vmatmul.f32.gmra.mxu0 %v511
    %v1103 = vpop.f32.mrf.mxu0
    %v1104 = vadd.f32 0.0, %v1103
    %1105 = vdwg.mxu0
    %1106 = vmatpush.msra.mxu0 0.0
    %1107 = vmatpush.msra.mxu0 0.0
    %1108 = vmatpush.msra.mxu0 0.0
    %1109 = vmatpush.msra.mxu0 0.0
    %1110 = vmatpush.msra.mxu0 0.0
    %1111 = vmatpush.msra.mxu0 0.0
    %1112 = vmatpush.msra.mxu0 0.0
    %1113 = vmatpush.msra.mxu0 0.0
    %1114 = vmatpush.msra.mxu0 0.0
    %1115 = vmatpush.msra.mxu0 0.0
    %1116 = vmatpush.msra.mxu0 0.0
    %1117 = vmatpush.msra.mxu0 0.0
    %1118 = vmatpush.msra.mxu0 0.0
    %1119 = vmatpush.msra.mxu0 0.0
    %1120 = vmatpush.msra.mxu0 0.0
    %1121 = vmatpush.msra.mxu0 %v1104
    %1122 = vmatmul.f32.gmra.mxu0 %v441
    %v1123 = vpop.f32.mrf.mxu0
    %v1124 = vadd.f32 1e-09, %v1123
    %1125 = vmatmul.f32.gmra.mxu0 %v444
    %v1126 = vpop.f32.mrf.mxu0
    %v1127 = vadd.f32 1e-09, %v1126
    %1128 = vdwg.mxu0
    %v1129 = vrcp.pop %v1124
    %v1130 = vrcp.pop %v1127
    %v1131 = vmul.f32 %v1083, %v1129
    %v1132 = vmul.f32 %v1085, %v1130
    %1134 = vset.pattern.permute.xlu0 0
    %1135 = vperm.xlu0 %1134, %v1131
    %v1136 = vpop.permute.xlu0 %1135
    %1139 = vset.pattern.permute.xlu0 0
    %1140 = vperm.xlu0 %1139, %v1132
    %v1141 = vpop.permute.xlu0 %1140
    %v1143 = vmul.f32 %v990, %v1136
    %v1144 = vmul.f32 %v992, %v1141
    %v1145 = vpack.c.bf16 %v1144, %v1143
    %v1146 = vld [vmem:[%s19] sm:$0x1]
    %v1148 = vperm.slane %v1146, 0
    %1150 = vmatpush.bf16.msra.mxu0 0
    %1151 = vmatpush.bf16.msra.mxu0 0
    %1152 = vmatpush.bf16.msra.mxu0 0
    %1153 = vmatpush.bf16.msra.mxu0 0
    %1154 = vmatpush.bf16.msra.mxu0 0
    %1155 = vmatpush.bf16.msra.mxu0 0
    %1156 = vmatpush.bf16.msra.mxu0 0
    %1157 = vmatpush.bf16.msra.mxu0 %v1145
    %1158 = vmatmul.bf16.gmra.mxu0 %v841
    %v1159 = vpop.f32.mrf.mxu0
    %v1160 = vadd.f32 %v1148, %v1159
    %v1161 = vpop.f32.mrf.mxu0
    %1162 = vdwg.mxu0
    %v1163 = vld [vmem:[%s20] sm:$0x1]
    %v1165 = vperm.slane %v1163, 0
    %v1167 = vmul.f32 %v1160, %v1165
    %v1168 = vld [vmem:[%s21] sm:$0x1]
    %v1170 = vperm.slane %v1168, 0
    %v1172 = vadd.f32 %v1167, %v1170
    %v1173 = vmax.f32 %v1172, 0.0
    %v1174 = vld [vmem:[%s22] sm:$0xff]
    %v1175 = vld [vmem:[%s22 + $0x8] sm:$0xff]
    %v1176 = vld [vmem:[%s22 + $0x10] sm:$0xff]
    %v1177 = vld [vmem:[%s22 + $0x18] sm:$0xff]
    %v1178 = vld [vmem:[%s23] sm:$0x1]
    %v1180 = vperm.slane %v1178, 0
    %v1183 = vsel %vm169, %v1173, 0
    %1185 = vmatpush.msra.mxu0 0.0
    %1186 = vmatpush.msra.mxu0 0.0
    %1187 = vmatpush.msra.mxu0 0.0
    %1188 = vmatpush.msra.mxu0 0.0
    %1189 = vmatpush.msra.mxu0 0.0
    %1190 = vmatpush.msra.mxu0 0.0
    %1191 = vmatpush.msra.mxu0 0.0
    %1192 = vmatpush.msra.mxu0 0.0
    %1193 = vmatpush.msra.mxu0 0.0
    %1194 = vmatpush.msra.mxu0 0.0
    %1195 = vmatpush.msra.mxu0 0.0
    %1196 = vmatpush.msra.mxu0 0.0
    %1197 = vmatpush.msra.mxu0 %v1177
    %1198 = vmatpush.msra.mxu0 %v1176
    %1199 = vmatpush.msra.mxu0 %v1175
    %1200 = vmatpush.msra.mxu0 %v1174
    %1201 = vmatmul.f32.gmra.mxu0 %v1183
    %v1202 = vpop.f32.mrf.mxu0
    %v1203 = vadd.f32 %v1180, %v1202
    %1204 = vdwg.mxu0
    %1205 = vst [vmem:[#allocation2] sm:$0xff] %v1203
    // Predicated region
    $region98: #{tpu_custom_call.1} parent=1 // pred_check
      _
    $region99: #{tpu_custom_call.1} parent=1 // pred_check_branch
      %1207 = sbr.rel (0) target = $region101
    $region100: #{tpu_custom_call.1} parent=1 // pred_region
      %1209 = vsyncadd [#allocation3], 0
      %s1211 = sshll.u32 [#allocation2], 4
      %s1212 = int_to_ptr.vmem [resolvable:$true] %s1211
      %s1213 = sshll.u32 %s24, 4
      %s1214 = int_to_ptr.hbm [resolvable:$true] %s1213
      %1216 = dma.vmem_to_hbm [thread:$0]  %s1212, 128, %s1214, [#allocation3]
    $region101: #{tpu_custom_call.1} parent=1 // pred_fallthru
      _
    // Predicated region
    $region102: #{tpu_custom_call.1} parent=1 // pred_check
      _
    $region103: #{tpu_custom_call.1} parent=1 // pred_check_branch
      %1218 = sbr.rel (0) target = $region105
    $region104: #{tpu_custom_call.1} parent=1 // pred_region
      %1220 = dma.done [#allocation3], 128
    $region105: #{tpu_custom_call.1} parent=1 // pred_fallthru
      _
    %1221 = vsyncpa [#allocation3], 1

</llo_original>
